<compile_context>
chip_gen: v6e
topology: v6e:2x2x1
jax: 0.10.0
libtpu: 0.0.40
codegen_flags: <defaults>
</compile_context>

<pallas_src>
import jax
import jax.numpy as jnp
from jax.experimental import pallas as pl
from jax.experimental.pallas import tpu as pltpu


# ---------------------------------------------------------------------------
# Fused DownConv kernel (one image per grid step).
# ---------------------------------------------------------------------------
def _make_down_conv_kernel(h, w, wp, do_pool):
    """h, w: output spatial dims; wp = w + 4 (flat row stride of padded grid)."""
    lv1 = h * wp + 2 * wp + 2          # conv1 output length (flat, width wp)
    lv2 = h * wp                       # conv2 output length (flat, width wp)
    offs = [ky * wp + kx for ky in range(3) for kx in range(3)]

    def kernel(x_ref, w1_ref, s1_ref, b1_ref, w2_ref, s2_ref, b2_ref,
               m1_ref, *out_refs):
        # x_ref : (1, Cp, Lx)   zero-padded input, flat spatial on lanes
        # w1_ref: (C1, 9*Cp)    conv_in weights, taps merged into K
        # w2_ref: (Cout, 9*C1)  conv_out weights
        # s*/b* : (C, 1)        folded BN scale / bias (conv bias included)
        # m1_ref: (1, lv1)      interior mask == conv_out's zero padding
        bp_ref = out_refs[0]
        x = x_ref[0]                                   # (Cp, Lx), MXU dtype

        # ---- conv_in: one weight-stationary matmul (C1, 9Cp) @ (9Cp, lv1) ---
        rhs1 = jnp.concatenate([x[:, s:s + lv1] for s in offs], axis=0)
        y1 = jnp.dot(w1_ref[...], rhs1, preferred_element_type=jnp.float32)
        a1 = jnp.maximum(y1 * s1_ref[...] + b1_ref[...], 0.0) * m1_ref[...]
        a1 = a1.astype(w2_ref.dtype)                   # MXU operand dtype

        # ---- conv_out: (Cout, 9C1) @ (9C1, lv2) ------------------------------
        rhs2 = jnp.concatenate([a1[:, s:s + lv2] for s in offs], axis=0)
        y2 = jnp.dot(w2_ref[...], rhs2, preferred_element_type=jnp.float32)
        a2 = jnp.maximum(y2 * s2_ref[...] + b2_ref[...], 0.0)   # (Cout, h*wp)

        # ---- before_pool: gather valid columns, single lane-dense store -----
        rows = [a2[:, y * wp: y * wp + w] for y in range(h)]
        bp_ref[0] = jnp.concatenate(rows, axis=1).astype(bp_ref.dtype)

        # ---- fused 2x2 / stride-2 max pool -----------------------------------
        if do_pool:
            pool_ref = out_refs[1]
            rmax = jnp.maximum(a2[:, :lv2 - wp], a2[:, wp:])     # row pairs
            cmax = jnp.maximum(rmax[:, :-1], rmax[:, 1:])        # col pairs
            r_i = jax.lax.broadcasted_iota(jnp.int32, (w, w // 2), 0)
            c_i = jax.lax.broadcasted_iota(jnp.int32, (w, w // 2), 1)
            sel = (r_i == 2 * c_i).astype(jnp.float32)           # (w, w/2)
            prows = [jnp.dot(cmax[:, 2 * y2 * wp: 2 * y2 * wp + w], sel,
                             preferred_element_type=jnp.float32)
                     for y2 in range(h // 2)]
            pool_ref[0] = jnp.concatenate(prows, axis=1).astype(pool_ref.dtype)

    return kernel


# ---------------------------------------------------------------------------
# Parameter folding / layout plumbing + pallas_call wrapper.
# ---------------------------------------------------------------------------
def _fold_bn(conv_bias, gamma, beta, mean, var, eps, co_pad):
    scale = gamma / jnp.sqrt(var + eps)
    bias = (conv_bias - mean) * scale + beta
    scale = jnp.pad(scale, (0, co_pad - scale.shape[0]))
    bias = jnp.pad(bias, (0, co_pad - bias.shape[0]))
    return (scale.reshape(co_pad, 1).astype(jnp.float32),
            bias.reshape(co_pad, 1).astype(jnp.float32))


def _tap_matrix(w_oihw, co_pad, ci_pad):
    """(O, I, 3, 3) -> (co_pad, 9*ci_pad); column order (ky, kx, ci)."""
    co, ci, _, _ = w_oihw.shape
    wt = jnp.transpose(w_oihw, (0, 2, 3, 1))                   # (O, 3, 3, I)
    wt = jnp.pad(wt, ((0, co_pad - co), (0, 0), (0, 0), (0, ci_pad - ci)))
    return wt.reshape(co_pad, 9 * ci_pad)


def down_conv_forward(x_nchw, params, pooling=True, eps=1e-5,
                      mxu_dtype=jnp.float32):
    n, cin, h, w = x_nchw.shape
    assert h % 2 == 0 and w % 2 == 0, "maxpool2x2 needs even H, W"
    w1, b1, g1, be1, m1, v1 = params["conv_in"]
    w2, b2, g2, be2, m2, v2 = params["conv_out"]
    cout = w1.shape[0]

    itm = 2 if mxu_dtype == jnp.bfloat16 else 4
    pack = 16 if itm == 2 else 8                 # bf16 needs 16-row packing
    cp = -(-cin // pack) * pack                  # conv_in K channels
    c1 = -(-cout // pack) * pack                 # intermediate channels

    wp = w + 4                                   # flat row stride
    lx = (h + 5) * wp                            # padded flat input length
    lv1 = h * wp + 2 * wp + 2
    lv2 = h * wp

    # Single zero-padded input copy: pad channels->cp, H by (2,3), W by (2,2),
    # then flatten spatial onto the lane dim (free reshape in HBM).
    xg = jnp.pad(x_nchw, ((0, 0), (0, cp - cin), (2, 3), (2, 2)))
    xg = xg.reshape(n, cp, lx).astype(mxu_dtype)

    w1m = _tap_matrix(w1, c1, cp).astype(mxu_dtype)      # (c1, 9*cp)
    w2m = _tap_matrix(w2, cout, c1).astype(mxu_dtype)    # (cout, 9*c1)
    s1, bb1 = _fold_bn(b1, g1, be1, m1, v1, eps, c1)
    s2, bb2 = _fold_bn(b2, g2, be2, m2, v2, eps, cout)

    # Interior mask of the conv_in output grid: doubles as conv_out's zero pad
    # and kills row-wrap garbage of the flat-shift taps.
    p = jnp.arange(lv1)
    r0, c0 = p // wp, p % wp
    mask1 = (((r0 >= 1) & (r0 <= h) & (c0 >= 1) & (c0 <= w))
             .astype(jnp.float32).reshape(1, lv1))

    kernel = _make_down_conv_kernel(h, w, wp, pooling)

    out_shape = [jax.ShapeDtypeStruct((n, cout, h * w), x_nchw.dtype)]
    out_specs = [pl.BlockSpec((1, cout, h * w), lambda i: (i, 0, 0))]
    if pooling:
        np_ = (h // 2) * (w // 2)
        out_shape.append(jax.ShapeDtypeStruct((n, cout, np_), x_nchw.dtype))
        out_specs.append(pl.BlockSpec((1, cout, np_), lambda i: (i, 0, 0)))

    flops = 2 * n * (c1 * 9 * cp * lv1 + cout * 9 * c1 * lv2)
    if pooling:
        flops += 2 * n * (h // 2) * cout * w * (w // 2)
    out_itm = x_nchw.dtype.itemsize
    bytes_accessed = (xg.size * itm + (w1m.size + w2m.size) * itm
                      + (s1.size + bb1.size + s2.size + bb2.size
                         + mask1.size) * 4
                      + n * cout * h * w * out_itm
                      + (n * cout * (h // 2) * (w // 2) * out_itm
                         if pooling else 0))

    outs = pl.pallas_call(
        kernel,
        out_shape=tuple(out_shape),
        grid=(n,),
        in_specs=[
            pl.BlockSpec((1, cp, lx), lambda i: (i, 0, 0)),
            pl.BlockSpec((c1, 9 * cp), lambda i: (0, 0)),
            pl.BlockSpec((c1, 1), lambda i: (0, 0)),
            pl.BlockSpec((c1, 1), lambda i: (0, 0)),
            pl.BlockSpec((cout, 9 * c1), lambda i: (0, 0)),
            pl.BlockSpec((cout, 1), lambda i: (0, 0)),
            pl.BlockSpec((cout, 1), lambda i: (0, 0)),
            pl.BlockSpec((1, lv1), lambda i: (0, 0)),
        ],
        out_specs=tuple(out_specs),
        compiler_params=pltpu.CompilerParams(
            dimension_semantics=("parallel",),
            vmem_limit_bytes=64 * 1024 * 1024),
        cost_estimate=pl.CostEstimate(
            flops=int(flops), transcendentals=0,
            bytes_accessed=int(bytes_accessed)),
    )(xg, w1m, s1, bb1, w2m, s2, bb2, mask1)

    before_pool = outs[0].reshape(n, cout, h, w)         # free contiguous split
    if pooling:
        pooled = outs[1].reshape(n, cout, h // 2, w // 2)
        return pooled, before_pool
    return before_pool, before_pool


# ---------------------------------------------------------------------------
# Pure-JAX reference (same eval-mode semantics) + synthetic params + smoke test
# ---------------------------------------------------------------------------
def _reference_down_conv(x, params, pooling=True, eps=1e-5):
    def block(x, p):
        wt, b, g, be, m, v = p
        y = jax.lax.conv_general_dilated(
            x, wt, window_strides=(1, 1), padding=((1, 1), (1, 1)),
            dimension_numbers=("NCHW", "OIHW", "NCHW"),
            precision=jax.lax.Precision.HIGHEST)
        y = y + b[None, :, None, None]
        s = g / jnp.sqrt(v + eps)
        y = (y - m[None, :, None, None]) * s[None, :, None, None] \
            + be[None, :, None, None]
        return jnp.maximum(y, 0.0)

    y = block(block(x, params["conv_in"]), params["conv_out"])
    if not pooling:
        return y, y
    n, c, h, w = y.shape
    pooled = jnp.max(y.reshape(n, c, h // 2, 2, w // 2, 2), axis=(3, 5))
    return pooled, y


def init_params(key, cin, cout):
    """Deterministic synthetic parameters matching the torch module shapes."""
    def conv_bn(k, ci, co):
        ks = jax.random.split(k, 6)
        bound = 1.0 / jnp.sqrt(jnp.float32(ci * 9))
        wt = jax.random.uniform(ks[0], (co, ci, 3, 3), jnp.float32,
                                -bound, bound)            # Conv2d.weight
        b = jax.random.uniform(ks[1], (co,), jnp.float32, -bound, bound)
        gamma = jax.random.uniform(ks[2], (co,), jnp.float32, 0.5, 1.5)
        beta = 0.1 * jax.random.normal(ks[3], (co,), jnp.float32)
        mean = 0.1 * jax.random.normal(ks[4], (co,), jnp.float32)
        var = jax.random.uniform(ks[5], (co,), jnp.float32, 0.5, 1.5)
        return (wt, b, gamma, beta, mean, var)

    k1, k2 = jax.random.split(key)
    return {"conv_in": conv_bn(k1, cin, cout),
            "conv_out": conv_bn(k2, cout, cout)}


if __name__ == "__main__":
    key = jax.random.PRNGKey(0)
    kx, kp = jax.random.split(key)

    N, Cin, H, W = 2, 4, 16, 16
    Cout = 8
    x = jax.random.normal(kx, (N, Cin, H, W), jnp.float32)   # PyTorch NCHW
    params = init_params(kp, Cin, Cout)

    ref_pooled, ref_before = _reference_down_conv(x, params, pooling=True)

    # --- f32 MXU operands (tight tolerance) --------------------------------
    pooled, before_pool = down_conv_forward(x, params, pooling=True)
    jax.block_until_ready((pooled, before_pool))
    assert pooled.shape == (N, Cout, H // 2, W // 2)
    assert before_pool.shape == (N, Cout, H, W)
    err_p = float(jnp.max(jnp.abs(pooled - ref_pooled)))
    err_b = float(jnp.max(jnp.abs(before_pool - ref_before)))
    assert err_p < 5e-3 and err_b < 5e-3, (err_p, err_b)

    # --- bf16 MXU operands (v6e/v7x fast path; f32 accumulate + epilogue) ---
    pooled_bf, before_bf = down_conv_forward(x, params, pooling=True,
                                             mxu_dtype=jnp.bfloat16)
    jax.block_until_ready((pooled_bf, before_bf))
    err_pb = float(jnp.max(jnp.abs(pooled_bf - ref_pooled)))
    err_bb = float(jnp.max(jnp.abs(before_bf - ref_before)))
    assert err_pb < 1e-1 and err_bb < 1e-1, (err_pb, err_bb)

    # --- pooling=False: kernel variant without the pool compute/output ------
    same, bp2 = down_conv_forward(x, params, pooling=False)
    jax.block_until_ready((same, bp2))
    assert same.shape == (N, Cout, H, W)
    err_np = float(jnp.max(jnp.abs(same - ref_before)))
    assert err_np < 5e-3, err_np

    print("KERNEL_OK")
</pallas_src>

<mosaic_0001>
module attributes {stable_mosaic.version = 11 : i64} {
  func.func @kernel(%arg0: i32, %arg1: memref<1x8x420xf32, #tpu.memory_space<vmem>>, %arg2: memref<8x72xf32, #tpu.memory_space<vmem>>, %arg3: memref<8x1xf32, #tpu.memory_space<vmem>>, %arg4: memref<8x1xf32, #tpu.memory_space<vmem>>, %arg5: memref<8x72xf32, #tpu.memory_space<vmem>>, %arg6: memref<8x1xf32, #tpu.memory_space<vmem>>, %arg7: memref<8x1xf32, #tpu.memory_space<vmem>>, %arg8: memref<1x362xf32, #tpu.memory_space<vmem>>, %arg9: memref<1x8x256xf32, #tpu.memory_space<vmem>>, %arg10: memref<1x8x64xf32, #tpu.memory_space<vmem>>) attributes {dimension_semantics = [#tpu.dimension_semantics<parallel>], iteration_bounds = array<i64: 2>, scalar_prefetch = 0 : i64, scratch_operands = 0 : i64, tpu.core_type = #tpu.core_type<tc>, window_params = [{transform_indices = @transform_0, window_bounds = array<i64: 1, 8, 420>}, {pipeline_mode = #tpu.pipeline_mode<synchronous>, transform_indices = @transform_1, window_bounds = array<i64: 8, 72>}, {pipeline_mode = #tpu.pipeline_mode<synchronous>, transform_indices = @transform_2, window_bounds = array<i64: 8, 1>}, {pipeline_mode = #tpu.pipeline_mode<synchronous>, transform_indices = @transform_3, window_bounds = array<i64: 8, 1>}, {pipeline_mode = #tpu.pipeline_mode<synchronous>, transform_indices = @transform_4, window_bounds = array<i64: 8, 72>}, {pipeline_mode = #tpu.pipeline_mode<synchronous>, transform_indices = @transform_5, window_bounds = array<i64: 8, 1>}, {pipeline_mode = #tpu.pipeline_mode<synchronous>, transform_indices = @transform_6, window_bounds = array<i64: 8, 1>}, {pipeline_mode = #tpu.pipeline_mode<synchronous>, transform_indices = @transform_7, window_bounds = array<i64: 1, 362>}, {transform_indices = @transform_8, window_bounds = array<i64: 1, 8, 256>}, {transform_indices = @transform_9, window_bounds = array<i64: 1, 8, 64>}]} {
    %c0 = arith.constant 0 : index
    %c0_0 = arith.constant 0 : index
    %c0_1 = arith.constant 0 : index
    %0 = vector.load %arg1[%c0, %c0_0, %c0_1] : memref<1x8x420xf32, #tpu.memory_space<vmem>>, vector<1x8x420xf32>
    %1 = vector.shape_cast %0 : vector<1x8x420xf32> to vector<8x420xf32>
    %2 = vector.extract_strided_slice %1 {offsets = [0, 0], sizes = [8, 362], strides = [1, 1]} : vector<8x420xf32> to vector<8x362xf32>
    %3 = vector.extract_strided_slice %1 {offsets = [0, 1], sizes = [8, 362], strides = [1, 1]} : vector<8x420xf32> to vector<8x362xf32>
    %4 = vector.extract_strided_slice %1 {offsets = [0, 2], sizes = [8, 362], strides = [1, 1]} : vector<8x420xf32> to vector<8x362xf32>
    %5 = vector.extract_strided_slice %1 {offsets = [0, 20], sizes = [8, 362], strides = [1, 1]} : vector<8x420xf32> to vector<8x362xf32>
    %6 = vector.extract_strided_slice %1 {offsets = [0, 21], sizes = [8, 362], strides = [1, 1]} : vector<8x420xf32> to vector<8x362xf32>
    %7 = vector.extract_strided_slice %1 {offsets = [0, 22], sizes = [8, 362], strides = [1, 1]} : vector<8x420xf32> to vector<8x362xf32>
    %8 = vector.extract_strided_slice %1 {offsets = [0, 40], sizes = [8, 362], strides = [1, 1]} : vector<8x420xf32> to vector<8x362xf32>
    %9 = vector.extract_strided_slice %1 {offsets = [0, 41], sizes = [8, 362], strides = [1, 1]} : vector<8x420xf32> to vector<8x362xf32>
    %10 = vector.extract_strided_slice %1 {offsets = [0, 42], sizes = [8, 362], strides = [1, 1]} : vector<8x420xf32> to vector<8x362xf32>
    %11 = tpu.concatenate %2, %3, %4, %5, %6, %7, %8, %9, %10 in 0 : vector<8x362xf32>, vector<8x362xf32>, vector<8x362xf32>, vector<8x362xf32>, vector<8x362xf32>, vector<8x362xf32>, vector<8x362xf32>, vector<8x362xf32>, vector<8x362xf32> -> vector<72x362xf32>
    %c0_2 = arith.constant 0 : index
    %c0_3 = arith.constant 0 : index
    %12 = vector.load %arg2[%c0_2, %c0_3] : memref<8x72xf32, #tpu.memory_space<vmem>>, vector<8x72xf32>
    %cst = arith.constant dense<0.000000e+00> : vector<8x362xf32>
    %13 = tpu.matmul %12, %11, %cst {dimension_numbers = #tpu.dot_dimension_numbers<[1], [0], [0], [1], [0, 0, 1, 1], [], []>} : vector<8x72xf32>, vector<72x362xf32>, vector<8x362xf32> -> vector<8x362xf32>
    %c0_4 = arith.constant 0 : index
    %c0_5 = arith.constant 0 : index
    %14 = vector.load %arg3[%c0_4, %c0_5] : memref<8x1xf32, #tpu.memory_space<vmem>>, vector<8x1xf32>
    %15 = vector.broadcast %14 : vector<8x1xf32> to vector<8x362xf32>
    %16 = arith.mulf %13, %15 : vector<8x362xf32>
    %c0_6 = arith.constant 0 : index
    %c0_7 = arith.constant 0 : index
    %17 = vector.load %arg4[%c0_6, %c0_7] : memref<8x1xf32, #tpu.memory_space<vmem>>, vector<8x1xf32>
    %18 = vector.broadcast %17 : vector<8x1xf32> to vector<8x362xf32>
    %19 = arith.addf %16, %18 : vector<8x362xf32>
    %cst_8 = arith.constant 0.000000e+00 : f32
    %20 = vector.broadcast %cst_8 : f32 to vector<8x362xf32>
    %21 = arith.maximumf %19, %20 : vector<8x362xf32>
    %c0_9 = arith.constant 0 : index
    %c0_10 = arith.constant 0 : index
    %22 = vector.load %arg8[%c0_9, %c0_10] : memref<1x362xf32, #tpu.memory_space<vmem>>, vector<1x362xf32>
    %23 = vector.broadcast %22 : vector<1x362xf32> to vector<8x362xf32>
    %24 = arith.mulf %21, %23 : vector<8x362xf32>
    %25 = vector.extract_strided_slice %24 {offsets = [0, 0], sizes = [8, 320], strides = [1, 1]} : vector<8x362xf32> to vector<8x320xf32>
    %26 = vector.extract_strided_slice %24 {offsets = [0, 1], sizes = [8, 320], strides = [1, 1]} : vector<8x362xf32> to vector<8x320xf32>
    %27 = vector.extract_strided_slice %24 {offsets = [0, 2], sizes = [8, 320], strides = [1, 1]} : vector<8x362xf32> to vector<8x320xf32>
    %28 = vector.extract_strided_slice %24 {offsets = [0, 20], sizes = [8, 320], strides = [1, 1]} : vector<8x362xf32> to vector<8x320xf32>
    %29 = vector.extract_strided_slice %24 {offsets = [0, 21], sizes = [8, 320], strides = [1, 1]} : vector<8x362xf32> to vector<8x320xf32>
    %30 = vector.extract_strided_slice %24 {offsets = [0, 22], sizes = [8, 320], strides = [1, 1]} : vector<8x362xf32> to vector<8x320xf32>
    %31 = vector.extract_strided_slice %24 {offsets = [0, 40], sizes = [8, 320], strides = [1, 1]} : vector<8x362xf32> to vector<8x320xf32>
    %32 = vector.extract_strided_slice %24 {offsets = [0, 41], sizes = [8, 320], strides = [1, 1]} : vector<8x362xf32> to vector<8x320xf32>
    %33 = vector.extract_strided_slice %24 {offsets = [0, 42], sizes = [8, 320], strides = [1, 1]} : vector<8x362xf32> to vector<8x320xf32>
    %34 = tpu.concatenate %25, %26, %27, %28, %29, %30, %31, %32, %33 in 0 : vector<8x320xf32>, vector<8x320xf32>, vector<8x320xf32>, vector<8x320xf32>, vector<8x320xf32>, vector<8x320xf32>, vector<8x320xf32>, vector<8x320xf32>, vector<8x320xf32> -> vector<72x320xf32>
    %c0_11 = arith.constant 0 : index
    %c0_12 = arith.constant 0 : index
    %35 = vector.load %arg5[%c0_11, %c0_12] : memref<8x72xf32, #tpu.memory_space<vmem>>, vector<8x72xf32>
    %cst_13 = arith.constant dense<0.000000e+00> : vector<8x320xf32>
    %36 = tpu.matmul %35, %34, %cst_13 {dimension_numbers = #tpu.dot_dimension_numbers<[1], [0], [0], [1], [0, 0, 1, 1], [], []>} : vector<8x72xf32>, vector<72x320xf32>, vector<8x320xf32> -> vector<8x320xf32>
    %c0_14 = arith.constant 0 : index
    %c0_15 = arith.constant 0 : index
    %37 = vector.load %arg6[%c0_14, %c0_15] : memref<8x1xf32, #tpu.memory_space<vmem>>, vector<8x1xf32>
    %38 = vector.broadcast %37 : vector<8x1xf32> to vector<8x320xf32>
    %39 = arith.mulf %36, %38 : vector<8x320xf32>
    %c0_16 = arith.constant 0 : index
    %c0_17 = arith.constant 0 : index
    %40 = vector.load %arg7[%c0_16, %c0_17] : memref<8x1xf32, #tpu.memory_space<vmem>>, vector<8x1xf32>
    %41 = vector.broadcast %40 : vector<8x1xf32> to vector<8x320xf32>
    %42 = arith.addf %39, %41 : vector<8x320xf32>
    %cst_18 = arith.constant 0.000000e+00 : f32
    %43 = vector.broadcast %cst_18 : f32 to vector<8x320xf32>
    %44 = arith.maximumf %42, %43 : vector<8x320xf32>
    %45 = vector.extract_strided_slice %44 {offsets = [0, 0], sizes = [8, 16], strides = [1, 1]} : vector<8x320xf32> to vector<8x16xf32>
    %46 = vector.extract_strided_slice %44 {offsets = [0, 20], sizes = [8, 16], strides = [1, 1]} : vector<8x320xf32> to vector<8x16xf32>
    %47 = vector.extract_strided_slice %44 {offsets = [0, 40], sizes = [8, 16], strides = [1, 1]} : vector<8x320xf32> to vector<8x16xf32>
    %48 = vector.extract_strided_slice %44 {offsets = [0, 60], sizes = [8, 16], strides = [1, 1]} : vector<8x320xf32> to vector<8x16xf32>
    %49 = vector.extract_strided_slice %44 {offsets = [0, 80], sizes = [8, 16], strides = [1, 1]} : vector<8x320xf32> to vector<8x16xf32>
    %50 = vector.extract_strided_slice %44 {offsets = [0, 100], sizes = [8, 16], strides = [1, 1]} : vector<8x320xf32> to vector<8x16xf32>
    %51 = vector.extract_strided_slice %44 {offsets = [0, 120], sizes = [8, 16], strides = [1, 1]} : vector<8x320xf32> to vector<8x16xf32>
    %52 = vector.extract_strided_slice %44 {offsets = [0, 140], sizes = [8, 16], strides = [1, 1]} : vector<8x320xf32> to vector<8x16xf32>
    %53 = vector.extract_strided_slice %44 {offsets = [0, 160], sizes = [8, 16], strides = [1, 1]} : vector<8x320xf32> to vector<8x16xf32>
    %54 = vector.extract_strided_slice %44 {offsets = [0, 180], sizes = [8, 16], strides = [1, 1]} : vector<8x320xf32> to vector<8x16xf32>
    %55 = vector.extract_strided_slice %44 {offsets = [0, 200], sizes = [8, 16], strides = [1, 1]} : vector<8x320xf32> to vector<8x16xf32>
    %56 = vector.extract_strided_slice %44 {offsets = [0, 220], sizes = [8, 16], strides = [1, 1]} : vector<8x320xf32> to vector<8x16xf32>
    %57 = vector.extract_strided_slice %44 {offsets = [0, 240], sizes = [8, 16], strides = [1, 1]} : vector<8x320xf32> to vector<8x16xf32>
    %58 = vector.extract_strided_slice %44 {offsets = [0, 260], sizes = [8, 16], strides = [1, 1]} : vector<8x320xf32> to vector<8x16xf32>
    %59 = vector.extract_strided_slice %44 {offsets = [0, 280], sizes = [8, 16], strides = [1, 1]} : vector<8x320xf32> to vector<8x16xf32>
    %60 = vector.extract_strided_slice %44 {offsets = [0, 300], sizes = [8, 16], strides = [1, 1]} : vector<8x320xf32> to vector<8x16xf32>
    %61 = tpu.concatenate %45, %46, %47, %48, %49, %50, %51, %52, %53, %54, %55, %56, %57, %58, %59, %60 in 1 : vector<8x16xf32>, vector<8x16xf32>, vector<8x16xf32>, vector<8x16xf32>, vector<8x16xf32>, vector<8x16xf32>, vector<8x16xf32>, vector<8x16xf32>, vector<8x16xf32>, vector<8x16xf32>, vector<8x16xf32>, vector<8x16xf32>, vector<8x16xf32>, vector<8x16xf32>, vector<8x16xf32>, vector<8x16xf32> -> vector<8x256xf32>
    %c0_19 = arith.constant 0 : index
    %c0_20 = arith.constant 0 : index
    %c0_21 = arith.constant 0 : index
    %62 = vector.load %arg9[%c0_19, %c0_20, %c0_21] : memref<1x8x256xf32, #tpu.memory_space<vmem>>, vector<1x8x256xf32>
    %63 = vector.shape_cast %62 : vector<1x8x256xf32> to vector<8x256xf32>
    %64 = vector.shape_cast %61 : vector<8x256xf32> to vector<1x8x256xf32>
    tpu.vector_store %arg9[%c0_19, %c0_20, %c0_21], %64 {strides = array<i32>} : memref<1x8x256xf32, #tpu.memory_space<vmem>>, vector<1x8x256xf32>,
    %65 = vector.extract_strided_slice %44 {offsets = [0, 0], sizes = [8, 300], strides = [1, 1]} : vector<8x320xf32> to vector<8x300xf32>
    %66 = vector.extract_strided_slice %44 {offsets = [0, 20], sizes = [8, 300], strides = [1, 1]} : vector<8x320xf32> to vector<8x300xf32>
    %67 = arith.maximumf %65, %66 : vector<8x300xf32>
    %68 = vector.extract_strided_slice %67 {offsets = [0, 0], sizes = [8, 299], strides = [1, 1]} : vector<8x300xf32> to vector<8x299xf32>
    %69 = vector.extract_strided_slice %67 {offsets = [0, 1], sizes = [8, 299], strides = [1, 1]} : vector<8x300xf32> to vector<8x299xf32>
    %70 = arith.maximumf %68, %69 : vector<8x299xf32>
    %71 = tpu.iota {dimensions = array<i32: 0>} : vector<16x8xi32>
    %72 = tpu.iota {dimensions = array<i32: 1>} : vector<16x8xi32>
    %c2_i32 = arith.constant 2 : i32
    %73 = vector.broadcast %c2_i32 : i32 to vector<16x8xi32>
    %74 = arith.muli %73, %72 : vector<16x8xi32>
    %75 = arith.cmpi eq, %71, %74 : vector<16x8xi32>
    %76 = arith.extui %75 : vector<16x8xi1> to vector<16x8xi32>
    %77 = arith.sitofp %76 : vector<16x8xi32> to vector<16x8xf32>
    %78 = vector.extract_strided_slice %70 {offsets = [0, 0], sizes = [8, 16], strides = [1, 1]} : vector<8x299xf32> to vector<8x16xf32>
    %cst_22 = arith.constant dense<0.000000e+00> : vector<8x8xf32>
    %79 = tpu.matmul %78, %77, %cst_22 {dimension_numbers = #tpu.dot_dimension_numbers<[1], [0], [0], [1], [0, 0, 1, 1], [], []>} : vector<8x16xf32>, vector<16x8xf32>, vector<8x8xf32> -> vector<8x8xf32>
    %80 = vector.extract_strided_slice %70 {offsets = [0, 40], sizes = [8, 16], strides = [1, 1]} : vector<8x299xf32> to vector<8x16xf32>
    %cst_23 = arith.constant dense<0.000000e+00> : vector<8x8xf32>
    %81 = tpu.matmul %80, %77, %cst_23 {dimension_numbers = #tpu.dot_dimension_numbers<[1], [0], [0], [1], [0, 0, 1, 1], [], []>} : vector<8x16xf32>, vector<16x8xf32>, vector<8x8xf32> -> vector<8x8xf32>
    %82 = vector.extract_strided_slice %70 {offsets = [0, 80], sizes = [8, 16], strides = [1, 1]} : vector<8x299xf32> to vector<8x16xf32>
    %cst_24 = arith.constant dense<0.000000e+00> : vector<8x8xf32>
    %83 = tpu.matmul %82, %77, %cst_24 {dimension_numbers = #tpu.dot_dimension_numbers<[1], [0], [0], [1], [0, 0, 1, 1], [], []>} : vector<8x16xf32>, vector<16x8xf32>, vector<8x8xf32> -> vector<8x8xf32>
    %84 = vector.extract_strided_slice %70 {offsets = [0, 120], sizes = [8, 16], strides = [1, 1]} : vector<8x299xf32> to vector<8x16xf32>
    %cst_25 = arith.constant dense<0.000000e+00> : vector<8x8xf32>
    %85 = tpu.matmul %84, %77, %cst_25 {dimension_numbers = #tpu.dot_dimension_numbers<[1], [0], [0], [1], [0, 0, 1, 1], [], []>} : vector<8x16xf32>, vector<16x8xf32>, vector<8x8xf32> -> vector<8x8xf32>
    %86 = vector.extract_strided_slice %70 {offsets = [0, 160], sizes = [8, 16], strides = [1, 1]} : vector<8x299xf32> to vector<8x16xf32>
    %cst_26 = arith.constant dense<0.000000e+00> : vector<8x8xf32>
    %87 = tpu.matmul %86, %77, %cst_26 {dimension_numbers = #tpu.dot_dimension_numbers<[1], [0], [0], [1], [0, 0, 1, 1], [], []>} : vector<8x16xf32>, vector<16x8xf32>, vector<8x8xf32> -> vector<8x8xf32>
    %88 = vector.extract_strided_slice %70 {offsets = [0, 200], sizes = [8, 16], strides = [1, 1]} : vector<8x299xf32> to vector<8x16xf32>
    %cst_27 = arith.constant dense<0.000000e+00> : vector<8x8xf32>
    %89 = tpu.matmul %88, %77, %cst_27 {dimension_numbers = #tpu.dot_dimension_numbers<[1], [0], [0], [1], [0, 0, 1, 1], [], []>} : vector<8x16xf32>, vector<16x8xf32>, vector<8x8xf32> -> vector<8x8xf32>
    %90 = vector.extract_strided_slice %70 {offsets = [0, 240], sizes = [8, 16], strides = [1, 1]} : vector<8x299xf32> to vector<8x16xf32>
    %cst_28 = arith.constant dense<0.000000e+00> : vector<8x8xf32>
    %91 = tpu.matmul %90, %77, %cst_28 {dimension_numbers = #tpu.dot_dimension_numbers<[1], [0], [0], [1], [0, 0, 1, 1], [], []>} : vector<8x16xf32>, vector<16x8xf32>, vector<8x8xf32> -> vector<8x8xf32>
    %92 = vector.extract_strided_slice %70 {offsets = [0, 280], sizes = [8, 16], strides = [1, 1]} : vector<8x299xf32> to vector<8x16xf32>
    %cst_29 = arith.constant dense<0.000000e+00> : vector<8x8xf32>
    %93 = tpu.matmul %92, %77, %cst_29 {dimension_numbers = #tpu.dot_dimension_numbers<[1], [0], [0], [1], [0, 0, 1, 1], [], []>} : vector<8x16xf32>, vector<16x8xf32>, vector<8x8xf32> -> vector<8x8xf32>
    %94 = tpu.concatenate %79, %81, %83, %85, %87, %89, %91, %93 in 1 : vector<8x8xf32>, vector<8x8xf32>, vector<8x8xf32>, vector<8x8xf32>, vector<8x8xf32>, vector<8x8xf32>, vector<8x8xf32>, vector<8x8xf32> -> vector<8x64xf32>
    %c0_30 = arith.constant 0 : index
    %c0_31 = arith.constant 0 : index
    %c0_32 = arith.constant 0 : index
    %95 = vector.load %arg10[%c0_30, %c0_31, %c0_32] : memref<1x8x64xf32, #tpu.memory_space<vmem>>, vector<1x8x64xf32>
    %96 = vector.shape_cast %95 : vector<1x8x64xf32> to vector<8x64xf32>
    %97 = vector.shape_cast %94 : vector<8x64xf32> to vector<1x8x64xf32>
    tpu.vector_store %arg10[%c0_30, %c0_31, %c0_32], %97 {strides = array<i32>} : memref<1x8x64xf32, #tpu.memory_space<vmem>>, vector<1x8x64xf32>,
    return
  }
  func.func @transform_0(%arg0: i32) -> (i32, i32, i32) {
    %c0_i32 = arith.constant 0 : i32
    %c0_i32_0 = arith.constant 0 : i32
    %c0_i32_1 = arith.constant 0 : i32
    return %arg0, %c0_i32, %c0_i32_0 : i32, i32, i32
  }
  func.func @transform_1(%arg0: i32) -> (i32, i32) {
    %c0_i32 = arith.constant 0 : i32
    %c0_i32_0 = arith.constant 0 : i32
    %c0_i32_1 = arith.constant 0 : i32
    return %c0_i32, %c0_i32_0 : i32, i32
  }
  func.func @transform_2(%arg0: i32) -> (i32, i32) {
    %c0_i32 = arith.constant 0 : i32
    %c0_i32_0 = arith.constant 0 : i32
    %c0_i32_1 = arith.constant 0 : i32
    return %c0_i32, %c0_i32_0 : i32, i32
  }
  func.func @transform_3(%arg0: i32) -> (i32, i32) {
    %c0_i32 = arith.constant 0 : i32
    %c0_i32_0 = arith.constant 0 : i32
    %c0_i32_1 = arith.constant 0 : i32
    return %c0_i32, %c0_i32_0 : i32, i32
  }
  func.func @transform_4(%arg0: i32) -> (i32, i32) {
    %c0_i32 = arith.constant 0 : i32
    %c0_i32_0 = arith.constant 0 : i32
    %c0_i32_1 = arith.constant 0 : i32
    return %c0_i32, %c0_i32_0 : i32, i32
  }
  func.func @transform_5(%arg0: i32) -> (i32, i32) {
    %c0_i32 = arith.constant 0 : i32
    %c0_i32_0 = arith.constant 0 : i32
    %c0_i32_1 = arith.constant 0 : i32
    return %c0_i32, %c0_i32_0 : i32, i32
  }
  func.func @transform_6(%arg0: i32) -> (i32, i32) {
    %c0_i32 = arith.constant 0 : i32
    %c0_i32_0 = arith.constant 0 : i32
    %c0_i32_1 = arith.constant 0 : i32
    return %c0_i32, %c0_i32_0 : i32, i32
  }
  func.func @transform_7(%arg0: i32) -> (i32, i32) {
    %c0_i32 = arith.constant 0 : i32
    %c0_i32_0 = arith.constant 0 : i32
    %c0_i32_1 = arith.constant 0 : i32
    return %c0_i32, %c0_i32_0 : i32, i32
  }
  func.func @transform_8(%arg0: i32) -> (i32, i32, i32) {
    %c0_i32 = arith.constant 0 : i32
    %c0_i32_0 = arith.constant 0 : i32
    %c0_i32_1 = arith.constant 0 : i32
    return %arg0, %c0_i32, %c0_i32_0 : i32, i32, i32
  }
  func.func @transform_9(%arg0: i32) -> (i32, i32, i32) {
    %c0_i32 = arith.constant 0 : i32
    %c0_i32_0 = arith.constant 0 : i32
    %c0_i32_1 = arith.constant 0 : i32
    return %arg0, %c0_i32, %c0_i32_0 : i32, i32, i32
  }
}

</mosaic_0001>

<llo_original>
// kernel: tpu_custom_call.1
$region0: #{tpu_custom_call.1}
  #allocation0 [shape = 'u32[]', space=smem, size = 0x4, offset = 0x4, fixed_abs, tag = 'smem constant byte address 0x4 - core index']
  #allocation1 [shape = 'u32[144,128]{1,0:T(1,128)}', space=vmem, size = 0x12000, scoped, tag = 'internal scratch']
  %s0 = inlined_call_operand.hbm [shape: f32[2,8,420], index: 0, kind: input, shape index: {}]
  %s1 = inlined_call_operand.vmem [shape: f32[8,72], index: 1, kind: input, shape index: {}]
  %s2 = inlined_call_operand.vmem [shape: f32[8,1], index: 2, kind: input, shape index: {}]
  %s3 = inlined_call_operand.vmem [shape: f32[8,1], index: 3, kind: input, shape index: {}]
  %s4 = inlined_call_operand.vmem [shape: f32[8,72], index: 4, kind: input, shape index: {}]
  %s5 = inlined_call_operand.vmem [shape: f32[8,1], index: 5, kind: input, shape index: {}]
  %s6 = inlined_call_operand.vmem [shape: f32[8,1], index: 6, kind: input, shape index: {}]
  %s7 = inlined_call_operand.vmem [shape: f32[1,362], index: 7, kind: input, shape index: {}]
  %s8 = inlined_call_operand.hbm [shape: f32[2,8,256], index: 8, kind: output, shape index: {0}]
  %s9 = inlined_call_operand.hbm [shape: f32[2,8,64], index: 9, kind: output, shape index: {1}]
  %10 = xla_tuple %s8, %s9
  %s11 = sld [smem:[#allocation0]]
  $region77: #{tpu_custom_call.1} parent=0
    _
  %s13 = ssub.s32 1, %s11
  %s14 = scalar_select 0, %s13, %s11
  $region1: #{tpu_custom_call.1} parent=0
    #allocation2 [shape = 'u8[32768]{0}', space=vmem, size = 0x8000, scoped, tag = 'input window, operand 0']
    #allocation3 [shape = 's32[2]{0}', space=sflag, size = 0x8, scoped, tag = 'scoped memory for tpu_custom_call.1']
    #allocation4 [shape = 's32[2]{0}', space=sflag, size = 0x8, scoped, tag = 'scoped memory for tpu_custom_call.1']
    #allocation5 [shape = 'u8[16384]{0}', space=vmem, size = 0x4000, scoped, tag = 'output window, operand 0']
    #allocation6 [shape = 'u8[8192]{0}', space=vmem, size = 0x2000, scoped, tag = 'output window, operand 1']
    #allocation7 [shape = 's32[2]{0}', space=sflag, size = 0x8, scoped, tag = 'scoped memory for tpu_custom_call.1']
    %15 = vsyncpa [#allocation3], 0
    %s16 = scalar_lea.sflag [#allocation3], 1
    %17 = vsyncpa %s16, 0
    %18 = vsyncpa [#allocation4], 0
    %s19 = scalar_lea.sflag [#allocation4], 1
    %20 = vsyncpa %s19, 0
    %21 = vsyncpa [#allocation7], 0
    %s22 = scalar_lea.sflag [#allocation7], 1
    %23 = vsyncpa %s22, 0
    loop: start=0, step=1, limit=4
    $region2: #{tpu_custom_call.1} parent=1 // loop_pre_header
      _
    $region3: #{tpu_custom_call.1} parent=1 // loop_header
      %s25 = sphi 0, %s29
      %p26 = scmp.ge.s32.totalorder %s25, 4
      %s35 = sphi 0, %s37
      %s38 = sphi 0, %s35
      %s39 = sphi 0, %s38
      %s55 = sphi 0, %s39
      %s59 = sphi 0, %s59
      %s61 = sphi 0, %s59
      %s62 = sphi 0, %s61
      %s76 = sphi 0, %s62
      %s80 = sphi 0, %s80
      %s82 = sphi 0, %s80
      %s83 = sphi 0, %s82
      %s97 = sphi 0, %s83
      %s101 = sphi 0, %s101
      %s103 = sphi 0, %s101
      %s104 = sphi 0, %s103
      %s118 = sphi 0, %s104
      %s122 = sphi 0, %s122
      %s124 = sphi 0, %s122
      %s125 = sphi 0, %s124
      %s139 = sphi 0, %s125
      %s143 = sphi 0, %s143
      %s145 = sphi 0, %s143
      %s146 = sphi 0, %s145
      %s160 = sphi 0, %s146
      %s164 = sphi 0, %s164
      %s166 = sphi 0, %s164
      %s167 = sphi 0, %s166
      %s181 = sphi 0, %s167
      %s185 = sphi 0, %s185
      %s187 = sphi 0, %s185
      %s188 = sphi 0, %s187
      %s202 = sphi 0, %s188
      %s208 = sphi 0, %s210
      %s211 = sphi 0, %s208
      %s212 = sphi 0, %s211
      %s228 = sphi 0, %s212
      %s234 = sphi 0, %s236
      %s237 = sphi 0, %s234
      %s238 = sphi 0, %s237
      %s254 = sphi 0, %s238
    $region4: #{tpu_custom_call.1} parent=1 // loop_header_branch
      %28 = sbr.rel (%p26) target = $region8
    $region5: #{tpu_custom_call.1} parent=1 // loop_body
      %s30 = ssub.s32 %s25, 1
      %s31 = ssub.s32 %s25, 2
      %s32 = sadd.s32 %s25, 1
      %s33 = ssub.s32 %s25, %s32
      %p34 = scmp.eq.s32.totalorder %s33, 0
      %s36 = sadd.s32 %s35, 1
      %s37 = scalar_select %p34, %s35, %s36
      %p40 = pneg %p34
      %p41 = scmp.eq.s32.totalorder %s25, 1
      %p42 = por %p40, %p41
      %p43 = scmp.ne.s32.totalorder %s35, %s38
      %p44 = scmp.eq.s32.totalorder %s25, 0
      %p45 = por %p43, %p44
      %p46 = scmp.ne.s32.totalorder %s35, %s38
      %p47 = scmp.eq.s32.totalorder %s30, 1
      %p48 = por %p46, %p47
      %p49 = scmp.ne.s32.totalorder %s38, %s39
      %p50 = scmp.eq.s32.totalorder %s30, 0
      %p51 = por %p49, %p50
      %p52 = scmp.ne.s32.totalorder %s38, %s39
      %p53 = scmp.eq.s32.totalorder %s31, 1
      %p54 = por %p52, %p53
      %p56 = scmp.ne.s32.totalorder %s39, %s55
      %p57 = scmp.eq.s32.totalorder %s31, 0
      %p58 = por %p56, %p57
      %s60 = sadd.s32 %s59, 1
      %p63 = scmp.eq.s32.totalorder %s25, 1
      %p64 = scmp.ne.s32.totalorder %s59, %s61
      %p65 = scmp.eq.s32.totalorder %s25, 0
      %p66 = por %p64, %p65
      %p67 = scmp.ne.s32.totalorder %s59, %s61
      %p68 = scmp.eq.s32.totalorder %s30, 1
      %p69 = por %p67, %p68
      %p70 = scmp.ne.s32.totalorder %s61, %s62
      %p71 = scmp.eq.s32.totalorder %s30, 0
      %p72 = por %p70, %p71
      %p73 = scmp.ne.s32.totalorder %s61, %s62
      %p74 = scmp.eq.s32.totalorder %s31, 1
      %p75 = por %p73, %p74
      %p77 = scmp.ne.s32.totalorder %s62, %s76
      %p78 = scmp.eq.s32.totalorder %s31, 0
      %p79 = por %p77, %p78
      %s81 = sadd.s32 %s80, 1
      %p84 = scmp.eq.s32.totalorder %s25, 1
      %p85 = scmp.ne.s32.totalorder %s80, %s82
      %p86 = scmp.eq.s32.totalorder %s25, 0
      %p87 = por %p85, %p86
      %p88 = scmp.ne.s32.totalorder %s80, %s82
      %p89 = scmp.eq.s32.totalorder %s30, 1
      %p90 = por %p88, %p89
      %p91 = scmp.ne.s32.totalorder %s82, %s83
      %p92 = scmp.eq.s32.totalorder %s30, 0
      %p93 = por %p91, %p92
      %p94 = scmp.ne.s32.totalorder %s82, %s83
      %p95 = scmp.eq.s32.totalorder %s31, 1
      %p96 = por %p94, %p95
      %p98 = scmp.ne.s32.totalorder %s83, %s97
      %p99 = scmp.eq.s32.totalorder %s31, 0
      %p100 = por %p98, %p99
      %s102 = sadd.s32 %s101, 1
      %p105 = scmp.eq.s32.totalorder %s25, 1
      %p106 = scmp.ne.s32.totalorder %s101, %s103
      %p107 = scmp.eq.s32.totalorder %s25, 0
      %p108 = por %p106, %p107
      %p109 = scmp.ne.s32.totalorder %s101, %s103
      %p110 = scmp.eq.s32.totalorder %s30, 1
      %p111 = por %p109, %p110
      %p112 = scmp.ne.s32.totalorder %s103, %s104
      %p113 = scmp.eq.s32.totalorder %s30, 0
      %p114 = por %p112, %p113
      %p115 = scmp.ne.s32.totalorder %s103, %s104
      %p116 = scmp.eq.s32.totalorder %s31, 1
      %p117 = por %p115, %p116
      %p119 = scmp.ne.s32.totalorder %s104, %s118
      %p120 = scmp.eq.s32.totalorder %s31, 0
      %p121 = por %p119, %p120
      %s123 = sadd.s32 %s122, 1
      %p126 = scmp.eq.s32.totalorder %s25, 1
      %p127 = scmp.ne.s32.totalorder %s122, %s124
      %p128 = scmp.eq.s32.totalorder %s25, 0
      %p129 = por %p127, %p128
      %p130 = scmp.ne.s32.totalorder %s122, %s124
      %p131 = scmp.eq.s32.totalorder %s30, 1
      %p132 = por %p130, %p131
      %p133 = scmp.ne.s32.totalorder %s124, %s125
      %p134 = scmp.eq.s32.totalorder %s30, 0
      %p135 = por %p133, %p134
      %p136 = scmp.ne.s32.totalorder %s124, %s125
      %p137 = scmp.eq.s32.totalorder %s31, 1
      %p138 = por %p136, %p137
      %p140 = scmp.ne.s32.totalorder %s125, %s139
      %p141 = scmp.eq.s32.totalorder %s31, 0
      %p142 = por %p140, %p141
      %s144 = sadd.s32 %s143, 1
      %p147 = scmp.eq.s32.totalorder %s25, 1
      %p148 = scmp.ne.s32.totalorder %s143, %s145
      %p149 = scmp.eq.s32.totalorder %s25, 0
      %p150 = por %p148, %p149
      %p151 = scmp.ne.s32.totalorder %s143, %s145
      %p152 = scmp.eq.s32.totalorder %s30, 1
      %p153 = por %p151, %p152
      %p154 = scmp.ne.s32.totalorder %s145, %s146
      %p155 = scmp.eq.s32.totalorder %s30, 0
      %p156 = por %p154, %p155
      %p157 = scmp.ne.s32.totalorder %s145, %s146
      %p158 = scmp.eq.s32.totalorder %s31, 1
      %p159 = por %p157, %p158
      %p161 = scmp.ne.s32.totalorder %s146, %s160
      %p162 = scmp.eq.s32.totalorder %s31, 0
      %p163 = por %p161, %p162
      %s165 = sadd.s32 %s164, 1
      %p168 = scmp.eq.s32.totalorder %s25, 1
      %p169 = scmp.ne.s32.totalorder %s164, %s166
      %p170 = scmp.eq.s32.totalorder %s25, 0
      %p171 = por %p169, %p170
      %p172 = scmp.ne.s32.totalorder %s164, %s166
      %p173 = scmp.eq.s32.totalorder %s30, 1
      %p174 = por %p172, %p173
      %p175 = scmp.ne.s32.totalorder %s166, %s167
      %p176 = scmp.eq.s32.totalorder %s30, 0
      %p177 = por %p175, %p176
      %p178 = scmp.ne.s32.totalorder %s166, %s167
      %p179 = scmp.eq.s32.totalorder %s31, 1
      %p180 = por %p178, %p179
      %p182 = scmp.ne.s32.totalorder %s167, %s181
      %p183 = scmp.eq.s32.totalorder %s31, 0
      %p184 = por %p182, %p183
      %s186 = sadd.s32 %s185, 1
      %p189 = scmp.eq.s32.totalorder %s25, 1
      %p190 = scmp.ne.s32.totalorder %s185, %s187
      %p191 = scmp.eq.s32.totalorder %s25, 0
      %p192 = por %p190, %p191
      %p193 = scmp.ne.s32.totalorder %s185, %s187
      %p194 = scmp.eq.s32.totalorder %s30, 1
      %p195 = por %p193, %p194
      %p196 = scmp.ne.s32.totalorder %s187, %s188
      %p197 = scmp.eq.s32.totalorder %s30, 0
      %p198 = por %p196, %p197
      %p199 = scmp.ne.s32.totalorder %s187, %s188
      %p200 = scmp.eq.s32.totalorder %s31, 1
      %p201 = por %p199, %p200
      %p203 = scmp.ne.s32.totalorder %s188, %s202
      %p204 = scmp.eq.s32.totalorder %s31, 0
      %p205 = por %p203, %p204
      %s206 = ssub.s32 %s25, %s32
      %p207 = scmp.eq.s32.totalorder %s206, 0
      %s209 = sadd.s32 %s208, 1
      %s210 = scalar_select %p207, %s208, %s209
      %p213 = pneg %p207
      %p214 = scmp.eq.s32.totalorder %s25, 1
      %p215 = por %p213, %p214
      %p216 = scmp.ne.s32.totalorder %s208, %s211
      %p217 = scmp.eq.s32.totalorder %s25, 0
      %p218 = por %p216, %p217
      %p219 = scmp.ne.s32.totalorder %s208, %s211
      %p220 = scmp.eq.s32.totalorder %s30, 1
      %p221 = por %p219, %p220
      %p222 = scmp.ne.s32.totalorder %s211, %s212
      %p223 = scmp.eq.s32.totalorder %s30, 0
      %p224 = por %p222, %p223
      %p225 = scmp.ne.s32.totalorder %s211, %s212
      %p226 = scmp.eq.s32.totalorder %s31, 1
      %p227 = por %p225, %p226
      %p229 = scmp.ne.s32.totalorder %s212, %s228
      %p230 = scmp.eq.s32.totalorder %s31, 0
      %p231 = por %p229, %p230
      %s232 = ssub.s32 %s25, %s32
      %p233 = scmp.eq.s32.totalorder %s232, 0
      %s235 = sadd.s32 %s234, 1
      %s236 = scalar_select %p233, %s234, %s235
      %p239 = pneg %p233
      %p240 = scmp.eq.s32.totalorder %s25, 1
      %p241 = por %p239, %p240
      %p242 = scmp.ne.s32.totalorder %s234, %s237
      %p243 = scmp.eq.s32.totalorder %s25, 0
      %p244 = por %p242, %p243
      %p245 = scmp.ne.s32.totalorder %s234, %s237
      %p246 = scmp.eq.s32.totalorder %s30, 1
      %p247 = por %p245, %p246
      %p248 = scmp.ne.s32.totalorder %s237, %s238
      %p249 = scmp.eq.s32.totalorder %s30, 0
      %p250 = por %p248, %p249
      %p251 = scmp.ne.s32.totalorder %s237, %s238
      %p252 = scmp.eq.s32.totalorder %s31, 1
      %p253 = por %p251, %p252
      %p255 = scmp.ne.s32.totalorder %s238, %s254
      %p256 = scmp.eq.s32.totalorder %s31, 0
      %p257 = por %p255, %p256
      %p258 = scmp.le.s32.totalorder 1, %s25
      %p259 = scmp.lt.s32.totalorder %s25, 3
      %p260 = pnand %p258, %p259
      %p261 = pneg %p260
      // Predicated region
      $region9: #{tpu_custom_call.1} parent=5 // pred_check
        _
      $region10: #{tpu_custom_call.1} parent=5 // pred_check_branch
        %263 = sbr.rel (%p260) target = $region12
      $region11: #{tpu_custom_call.1} parent=5 // pred_region
        %s264 = ssub.s32 %s25, 1
        // Predicated region
        $region13: #{tpu_custom_call.1} parent=11 // pred_check
          %p265 = pneg %p72
        $region14: #{tpu_custom_call.1} parent=11 // pred_check_branch
          %267 = sbr.rel (%p265) target = $region16
        $region15: #{tpu_custom_call.1} parent=11 // pred_region
          _
        $region16: #{tpu_custom_call.1} parent=11 // pred_fallthru
          _
        // Predicated region
        $region17: #{tpu_custom_call.1} parent=11 // pred_check
          %p268 = pneg %p93
        $region18: #{tpu_custom_call.1} parent=11 // pred_check_branch
          %270 = sbr.rel (%p268) target = $region20
        $region19: #{tpu_custom_call.1} parent=11 // pred_region
          _
        $region20: #{tpu_custom_call.1} parent=11 // pred_fallthru
          _
        // Predicated region
        $region21: #{tpu_custom_call.1} parent=11 // pred_check
          %p271 = pneg %p114
        $region22: #{tpu_custom_call.1} parent=11 // pred_check_branch
          %273 = sbr.rel (%p271) target = $region24
        $region23: #{tpu_custom_call.1} parent=11 // pred_region
          _
        $region24: #{tpu_custom_call.1} parent=11 // pred_fallthru
          _
        // Predicated region
        $region25: #{tpu_custom_call.1} parent=11 // pred_check
          %p274 = pneg %p135
        $region26: #{tpu_custom_call.1} parent=11 // pred_check_branch
          %276 = sbr.rel (%p274) target = $region28
        $region27: #{tpu_custom_call.1} parent=11 // pred_region
          _
        $region28: #{tpu_custom_call.1} parent=11 // pred_fallthru
          _
        // Predicated region
        $region29: #{tpu_custom_call.1} parent=11 // pred_check
          %p277 = pneg %p156
        $region30: #{tpu_custom_call.1} parent=11 // pred_check_branch
          %279 = sbr.rel (%p277) target = $region32
        $region31: #{tpu_custom_call.1} parent=11 // pred_region
          _
        $region32: #{tpu_custom_call.1} parent=11 // pred_fallthru
          _
        // Predicated region
        $region33: #{tpu_custom_call.1} parent=11 // pred_check
          %p280 = pneg %p177
        $region34: #{tpu_custom_call.1} parent=11 // pred_check_branch
          %282 = sbr.rel (%p280) target = $region36
        $region35: #{tpu_custom_call.1} parent=11 // pred_region
          _
        $region36: #{tpu_custom_call.1} parent=11 // pred_fallthru
          _
        // Predicated region
        $region37: #{tpu_custom_call.1} parent=11 // pred_check
          %p283 = pneg %p198
        $region38: #{tpu_custom_call.1} parent=11 // pred_check_branch
          %285 = sbr.rel (%p283) target = $region40
        $region39: #{tpu_custom_call.1} parent=11 // pred_region
          _
        $region40: #{tpu_custom_call.1} parent=11 // pred_fallthru
          _
      $region12: #{tpu_custom_call.1} parent=5 // pred_fallthru
        _
      %p286 = scmp.lt.s32.totalorder %s25, 2
      // Predicated region
      $region41: #{tpu_custom_call.1} parent=5 // pred_check
        %p287 = pneg %p286
      $region42: #{tpu_custom_call.1} parent=5 // pred_check_branch
        %289 = sbr.rel (%p287) target = $region44
      $region43: #{tpu_custom_call.1} parent=5 // pred_region
        // Predicated region
        $region45: #{tpu_custom_call.1} parent=43 // pred_check
          %p290 = pneg %p45
        $region46: #{tpu_custom_call.1} parent=43 // pred_check_branch
          %292 = sbr.rel (%p290) target = $region48
        $region47: #{tpu_custom_call.1} parent=43 // pred_region
          %s293 = sand.u32 %s35, 1
          %s294 = scalar_lea.sflag [#allocation3], %s293
          %s295 = sand.u32 %s35, 1
          %s296 = smul.addr %s295, 32
          %s297 = scalar_lea.vmem [#allocation2], %s296
          %s299 = ssub.s32 512, 512
          %300 = vsyncadd %s294, %s299
          %s301 = smul.addr %s25, 4
          %s302 = smul.addr %s301, 128
          %s303 = scalar_lea.hbm %s0, %s302
          %s305 = sshll.u32 %s297, 4
          %s306 = int_to_ptr.vmem [resolvable:$true] %s305
          %308 = dma.hbm_to_vmem [thread:$0]  %s303, 512, %s306, %s294
        $region48: #{tpu_custom_call.1} parent=43 // pred_fallthru
          _
      $region44: #{tpu_custom_call.1} parent=5 // pred_fallthru
        _
      %p309 = scmp.le.s32.totalorder 1, %s25
      %p310 = scmp.lt.s32.totalorder %s25, 3
      %p311 = pnand %p309, %p310
      %p312 = pneg %p311
      // Predicated region
      $region49: #{tpu_custom_call.1} parent=5 // pred_check
        _
      $region50: #{tpu_custom_call.1} parent=5 // pred_check_branch
        %314 = sbr.rel (%p311) target = $region52
      $region51: #{tpu_custom_call.1} parent=5 // pred_region
        %s315 = ssub.s32 %s25, 1
        %s316 = sand.u32 %s38, 1
        %s317 = scalar_lea.sflag [#allocation3], %s316
        %s318 = sand.u32 %s38, 1
        %s319 = smul.addr %s318, 32
        %s320 = scalar_lea.vmem [#allocation2], %s319
        // Predicated region
        $region53: #{tpu_custom_call.1} parent=51 // pred_check
          %p321 = pneg %p51
        $region54: #{tpu_custom_call.1} parent=51 // pred_check_branch
          %323 = sbr.rel (%p321) target = $region56
        $region55: #{tpu_custom_call.1} parent=51 // pred_region
          %324 = dma.done %s317, 512
        $region56: #{tpu_custom_call.1} parent=51 // pred_fallthru
          _
        %s325 = sand.u32 %s38, 1
        %s326 = scalar_lea.sflag [#allocation3], %s325
        %s327 = sand.u32 %s38, 1
        %s328 = smul.addr %s327, 32
        %s329 = scalar_lea.vmem [#allocation2], %s328
        %p330 = pneg %p51
        %p331 = pneg %p48
        %p332 = pneg %p72
        %p333 = pneg %p69
        %p334 = pneg %p93
        %p335 = pneg %p90
        %p336 = pneg %p114
        %p337 = pneg %p111
        %p338 = pneg %p135
        %p339 = pneg %p132
        %p340 = pneg %p156
        %p341 = pneg %p153
        %p342 = pneg %p177
        %p343 = pneg %p174
        %p344 = pneg %p198
        %p345 = pneg %p195
        %p346 = pneg %p224
        %p347 = pneg %p221
        %s348 = sand.u32 %s211, 1
        %s349 = scalar_lea.sflag [#allocation4], %s348
        %s350 = sand.u32 %s211, 1
        %s351 = smul.addr %s350, 16
        %s352 = scalar_lea.vmem [#allocation5], %s351
        %p353 = pneg %p250
        %p354 = pneg %p247
        %s355 = sand.u32 %s237, 1
        %s356 = scalar_lea.sflag [#allocation7], %s355
        %s357 = sand.u32 %s237, 1
        %s358 = smul.addr %s357, 8
        %s359 = scalar_lea.vmem [#allocation6], %s358
        %v360 = vld [vmem:[%s320] sm:$0xff]
        %v361 = vld [vmem:[%s320 + $0x8] sm:$0xff]
        %v362 = vld [vmem:[%s320 + $0x10] sm:$0xff]
        %v363 = vld [vmem:[%s320 + $0x18] sm:$0xff]
        %367 = vrot.lane.b32.xlu0 %v360, 127
        %v368 = vpop.permute.xlu0 %367
        %369 = vrot.lane.b32.xlu0 %v361, 127
        %v370 = vpop.permute.xlu0 %369
        %371 = vrot.lane.b32.xlu0 %v362, 127
        %v372 = vpop.permute.xlu0 %371
        %vm373 = vcmask 1039360
        %v374 = vsel %vm373, %v368, %v370
        %v375 = vsel %vm373, %v370, %v372
        %379 = vrot.lane.b32.xlu0 %v360, 126
        %v380 = vpop.permute.xlu0 %379
        %381 = vrot.lane.b32.xlu0 %v361, 126
        %v382 = vpop.permute.xlu0 %381
        %383 = vrot.lane.b32.xlu0 %v362, 126
        %v384 = vpop.permute.xlu0 %383
        %vm385 = vcmask 1031168
        %v386 = vsel %vm385, %v380, %v382
        %v387 = vsel %vm385, %v382, %v384
        %391 = vrot.lane.b32.xlu0 %v360, 108
        %v392 = vpop.permute.xlu0 %391
        %393 = vrot.lane.b32.xlu0 %v361, 108
        %v394 = vpop.permute.xlu0 %393
        %395 = vrot.lane.b32.xlu0 %v362, 108
        %v396 = vpop.permute.xlu0 %395
        %vm397 = vcmask 883712
        %v398 = vsel %vm397, %v392, %v394
        %v399 = vsel %vm397, %v394, %v396
        %403 = vrot.lane.b32.xlu0 %v360, 107
        %v404 = vpop.permute.xlu0 %403
        %405 = vrot.lane.b32.xlu0 %v361, 107
        %v406 = vpop.permute.xlu0 %405
        %407 = vrot.lane.b32.xlu0 %v362, 107
        %v408 = vpop.permute.xlu0 %407
        %vm409 = vcmask 875520
        %v410 = vsel %vm409, %v404, %v406
        %v411 = vsel %vm409, %v406, %v408
        %415 = vrot.lane.b32.xlu0 %v360, 106
        %v416 = vpop.permute.xlu0 %415
        %417 = vrot.lane.b32.xlu0 %v361, 106
        %v418 = vpop.permute.xlu0 %417
        %419 = vrot.lane.b32.xlu0 %v362, 106
        %v420 = vpop.permute.xlu0 %419
        %vm421 = vcmask 867328
        %v422 = vsel %vm421, %v416, %v418
        %v423 = vsel %vm421, %v418, %v420
        %428 = vrot.lane.b32.xlu0 %v360, 88
        %v429 = vpop.permute.xlu0 %428
        %430 = vrot.lane.b32.xlu0 %v361, 88
        %v431 = vpop.permute.xlu0 %430
        %432 = vrot.lane.b32.xlu0 %v362, 88
        %v433 = vpop.permute.xlu0 %432
        %434 = vrot.lane.b32.xlu0 %v363, 88
        %v435 = vpop.permute.xlu0 %434
        %vm436 = vcmask 719872
        %v437 = vsel %vm436, %v429, %v431
        %v438 = vsel %vm436, %v431, %v433
        %v439 = vsel %vm436, %v433, %v435
        %443 = vrot.lane.b32.xlu0 %v360, 87
        %v444 = vpop.permute.xlu0 %443
        %445 = vrot.lane.b32.xlu0 %v361, 87
        %v446 = vpop.permute.xlu0 %445
        %447 = vrot.lane.b32.xlu0 %v362, 87
        %v448 = vpop.permute.xlu0 %447
        %449 = vrot.lane.b32.xlu0 %v363, 87
        %v450 = vpop.permute.xlu0 %449
        %vm451 = vcmask 711680
        %v452 = vsel %vm451, %v444, %v446
        %v453 = vsel %vm451, %v446, %v448
        %v454 = vsel %vm451, %v448, %v450
        %458 = vrot.lane.b32.xlu0 %v360, 86
        %v459 = vpop.permute.xlu0 %458
        %460 = vrot.lane.b32.xlu0 %v361, 86
        %v461 = vpop.permute.xlu0 %460
        %462 = vrot.lane.b32.xlu0 %v362, 86
        %v463 = vpop.permute.xlu0 %462
        %464 = vrot.lane.b32.xlu0 %v363, 86
        %v465 = vpop.permute.xlu0 %464
        %vm466 = vcmask 703488
        %v467 = vsel %vm466, %v459, %v461
        %v468 = vsel %vm466, %v461, %v463
        %v469 = vsel %vm466, %v463, %v465
        %v473 = vld [vmem:[%s1] sm:$0xff]
        %vm474 = vcmask 588800
        %v476 = vsel %vm474, %v473, 0
        %478 = vmatprep.subr.mxu0 0.0
        %479 = vmatpush1.msra.mxu0 0.0
        %480 = vmatprep.subr.mxu0 0.0
        %481 = vmatpush1.msra.mxu0 0.0
        %482 = vmatprep.subr.mxu0 0.0
        %483 = vmatpush1.msra.mxu0 0.0
        %484 = vmatprep.subr.mxu0 0.0
        %485 = vmatpush1.msra.mxu0 0.0
        %486 = vmatprep.subr.mxu0 0.0
        %487 = vmatpush1.msra.mxu0 0.0
        %488 = vmatprep.subr.mxu0 0.0
        %489 = vmatpush1.msra.mxu0 0.0
        %490 = vmatprep.subr.mxu0 0.0
        %491 = vmatpush1.msra.mxu0 0.0
        %492 = vmatprep.subr.mxu0 %v468
        %493 = vmatpush1.msra.mxu0 %v467
        %494 = vmatprep.subr.mxu0 %v453
        %495 = vmatpush1.msra.mxu0 %v452
        %496 = vmatprep.subr.mxu0 %v438
        %497 = vmatpush1.msra.mxu0 %v437
        %498 = vmatprep.subr.mxu0 %v423
        %499 = vmatpush1.msra.mxu0 %v422
        %500 = vmatprep.subr.mxu0 %v411
        %501 = vmatpush1.msra.mxu0 %v410
        %502 = vmatprep.subr.mxu0 %v399
        %503 = vmatpush1.msra.mxu0 %v398
        %504 = vmatprep.subr.mxu0 %v387
        %505 = vmatpush1.msra.mxu0 %v386
        %506 = vmatprep.subr.mxu0 %v375
        %507 = vmatpush1.msra.mxu0 %v374
        %508 = vmatprep.subr.mxu0 %v361
        %509 = vmatpush1.msra.mxu0 %v360
        %510 = vmatprep.subr.mxu0 0.0
        %511 = vmatpush2.msra.mxu0 0.0
        %512 = vmatprep.subr.mxu0 0.0
        %513 = vmatpush2.msra.mxu0 0.0
        %514 = vmatprep.subr.mxu0 0.0
        %515 = vmatpush2.msra.mxu0 0.0
        %516 = vmatprep.subr.mxu0 0.0
        %517 = vmatpush2.msra.mxu0 0.0
        %518 = vmatprep.subr.mxu0 0.0
        %519 = vmatpush2.msra.mxu0 0.0
        %520 = vmatprep.subr.mxu0 0.0
        %521 = vmatpush2.msra.mxu0 0.0
        %522 = vmatprep.subr.mxu0 0.0
        %523 = vmatpush2.msra.mxu0 0.0
        %524 = vmatprep.subr.mxu0 0.0
        %525 = vmatpush2.msra.mxu0 0.0
        %526 = vmatprep.subr.mxu0 0.0
        %527 = vmatpush2.msra.mxu0 0.0
        %528 = vmatprep.subr.mxu0 0.0
        %529 = vmatpush2.msra.mxu0 0.0
        %530 = vmatprep.subr.mxu0 0.0
        %531 = vmatpush2.msra.mxu0 0.0
        %532 = vmatprep.subr.mxu0 0.0
        %533 = vmatpush2.msra.mxu0 0.0
        %534 = vmatprep.subr.mxu0 0.0
        %535 = vmatpush2.msra.mxu0 0.0
        %536 = vmatprep.subr.mxu0 0.0
        %537 = vmatpush2.msra.mxu0 0.0
        %538 = vmatprep.subr.mxu0 0.0
        %539 = vmatpush2.msra.mxu0 0.0
        %540 = vmatprep.subr.mxu0 0.0
        %541 = vmatpush2.msra.mxu0 0.0
        %542 = vmatprep.mubr.f32.mxu0 0.0
        %543 = vmatmul.mubr.f32.gmra.mxu0 %v476
        %v544 = vpop.f32.mrf.mxu0
        %v545 = vadd.f32 0.0, %v544
        %v546 = vpop.f32.mrf.mxu0
        %v547 = vadd.f32 0.0, %v546
        %548 = vdwg.mxu0
        %549 = vmatprep.subr.mxu0 0.0
        %550 = vmatpush1.msra.mxu0 0.0
        %551 = vmatprep.subr.mxu0 0.0
        %552 = vmatpush1.msra.mxu0 0.0
        %553 = vmatprep.subr.mxu0 0.0
        %554 = vmatpush1.msra.mxu0 0.0
        %555 = vmatprep.subr.mxu0 0.0
        %556 = vmatpush1.msra.mxu0 0.0
        %557 = vmatprep.subr.mxu0 0.0
        %558 = vmatpush1.msra.mxu0 0.0
        %559 = vmatprep.subr.mxu0 0.0
        %560 = vmatpush1.msra.mxu0 0.0
        %561 = vmatprep.subr.mxu0 0.0
        %562 = vmatpush1.msra.mxu0 0.0
        %563 = vmatprep.subr.mxu0 0.0
        %564 = vmatpush1.msra.mxu0 %v469
        %565 = vmatprep.subr.mxu0 0.0
        %566 = vmatpush1.msra.mxu0 %v454
        %567 = vmatprep.subr.mxu0 0.0
        %568 = vmatpush1.msra.mxu0 %v439
        %569 = vmatprep.subr.mxu0 0.0
        %570 = vmatpush1.msra.mxu0 %v420
        %571 = vmatprep.subr.mxu0 0.0
        %572 = vmatpush1.msra.mxu0 %v408
        %573 = vmatprep.subr.mxu0 0.0
        %574 = vmatpush1.msra.mxu0 %v396
        %575 = vmatprep.subr.mxu0 0.0
        %576 = vmatpush1.msra.mxu0 %v384
        %577 = vmatprep.subr.mxu0 0.0
        %578 = vmatpush1.msra.mxu0 %v372
        %579 = vmatprep.subr.mxu0 0.0
        %580 = vmatpush1.msra.mxu0 %v362
        %581 = vmatprep.subr.mxu0 0.0
        %582 = vmatpush2.msra.mxu0 0.0
        %583 = vmatprep.subr.mxu0 0.0
        %584 = vmatpush2.msra.mxu0 0.0
        %585 = vmatprep.subr.mxu0 0.0
        %586 = vmatpush2.msra.mxu0 0.0
        %587 = vmatprep.subr.mxu0 0.0
        %588 = vmatpush2.msra.mxu0 0.0
        %589 = vmatprep.subr.mxu0 0.0
        %590 = vmatpush2.msra.mxu0 0.0
        %591 = vmatprep.subr.mxu0 0.0
        %592 = vmatpush2.msra.mxu0 0.0
        %593 = vmatprep.subr.mxu0 0.0
        %594 = vmatpush2.msra.mxu0 0.0
        %595 = vmatprep.subr.mxu0 0.0
        %596 = vmatpush2.msra.mxu0 0.0
        %597 = vmatprep.subr.mxu0 0.0
        %598 = vmatpush2.msra.mxu0 0.0
        %599 = vmatprep.subr.mxu0 0.0
        %600 = vmatpush2.msra.mxu0 0.0
        %601 = vmatprep.subr.mxu0 0.0
        %602 = vmatpush2.msra.mxu0 0.0
        %603 = vmatprep.subr.mxu0 0.0
        %604 = vmatpush2.msra.mxu0 0.0
        %605 = vmatprep.subr.mxu0 0.0
        %606 = vmatpush2.msra.mxu0 0.0
        %607 = vmatprep.subr.mxu0 0.0
        %608 = vmatpush2.msra.mxu0 0.0
        %609 = vmatprep.subr.mxu0 0.0
        %610 = vmatpush2.msra.mxu0 0.0
        %611 = vmatprep.subr.mxu0 0.0
        %612 = vmatpush2.msra.mxu0 0.0
        %613 = vmatprep.mubr.f32.mxu0 0.0
        %614 = vmatmul.mubr.f32.gmra.mxu0 %v476
        %v615 = vpop.f32.mrf.mxu0
        %v616 = vadd.f32 0.0, %v615
        %v617 = vpop.f32.mrf.mxu0
        %618 = vdwg.mxu0
        %v619 = vld [vmem:[%s2] sm:$0xff]
        %621 = vset.pattern.permute.xlu0 0
        %622 = vperm.xlu0 %621, %v619
        %v623 = vpop.permute.xlu0 %622
        %v625 = vmul.f32 %v545, %v623
        %v626 = vmul.f32 %v547, %v623
        %v627 = vmul.f32 %v616, %v623
        %v628 = vld [vmem:[%s3] sm:$0xff]
        %630 = vset.pattern.permute.xlu0 0
        %631 = vperm.xlu0 %630, %v628
        %v632 = vpop.permute.xlu0 %631
        %v634 = vadd.f32 %v625, %v632
        %v635 = vadd.f32 %v626, %v632
        %v636 = vadd.f32 %v627, %v632
        %v637 = vmax.f32 %v634, 0.0
        %v638 = vmax.f32 %v635, 0.0
        %v639 = vmax.f32 %v636, 0.0
        %v640 = vld [vmem:[%s7] sm:$0x7]
        %v642 = vlaneseq
        %v643 = vshrl.u32 %v642, 7
        %v644 = vsub.s32 0, %v643
        %v645 = vrot.slane %v640, %v644
        %v646 = vlaneseq
        %v647 = vshrl.u32 %v646, 7
        %v648 = vsub.s32 1, %v647
        %v649 = vrot.slane %v640, %v648
        %v650 = vlaneseq
        %v651 = vshrl.u32 %v650, 7
        %v652 = vsub.s32 2, %v651
        %v653 = vrot.slane %v640, %v652
        %v657 = vmul.f32 %v637, %v645
        %v658 = vmul.f32 %v638, %v649
        %v659 = vmul.f32 %v639, %v653
        %663 = vrot.lane.b32.xlu0 %v657, 127
        %v664 = vpop.permute.xlu0 %663
        %665 = vrot.lane.b32.xlu0 %v658, 127
        %v666 = vpop.permute.xlu0 %665
        %667 = vrot.lane.b32.xlu0 %v659, 127
        %v668 = vpop.permute.xlu0 %667
        %v669 = vsel %vm373, %v664, %v666
        %v670 = vsel %vm373, %v666, %v668
        %674 = vrot.lane.b32.xlu0 %v657, 126
        %v675 = vpop.permute.xlu0 %674
        %676 = vrot.lane.b32.xlu0 %v658, 126
        %v677 = vpop.permute.xlu0 %676
        %678 = vrot.lane.b32.xlu0 %v659, 126
        %v679 = vpop.permute.xlu0 %678
        %v680 = vsel %vm385, %v675, %v677
        %v681 = vsel %vm385, %v677, %v679
        %685 = vrot.lane.b32.xlu0 %v657, 108
        %v686 = vpop.permute.xlu0 %685
        %687 = vrot.lane.b32.xlu0 %v658, 108
        %v688 = vpop.permute.xlu0 %687
        %689 = vrot.lane.b32.xlu0 %v659, 108
        %v690 = vpop.permute.xlu0 %689
        %v691 = vsel %vm397, %v686, %v688
        %v692 = vsel %vm397, %v688, %v690
        %696 = vrot.lane.b32.xlu0 %v657, 107
        %v697 = vpop.permute.xlu0 %696
        %698 = vrot.lane.b32.xlu0 %v658, 107
        %v699 = vpop.permute.xlu0 %698
        %700 = vrot.lane.b32.xlu0 %v659, 107
        %v701 = vpop.permute.xlu0 %700
        %v702 = vsel %vm409, %v697, %v699
        %v703 = vsel %vm409, %v699, %v701
        %707 = vrot.lane.b32.xlu0 %v657, 106
        %v708 = vpop.permute.xlu0 %707
        %709 = vrot.lane.b32.xlu0 %v658, 106
        %v710 = vpop.permute.xlu0 %709
        %711 = vrot.lane.b32.xlu0 %v659, 106
        %v712 = vpop.permute.xlu0 %711
        %v713 = vsel %vm421, %v708, %v710
        %v714 = vsel %vm421, %v710, %v712
        %718 = vrot.lane.b32.xlu0 %v657, 88
        %v719 = vpop.permute.xlu0 %718
        %720 = vrot.lane.b32.xlu0 %v658, 88
        %v721 = vpop.permute.xlu0 %720
        %722 = vrot.lane.b32.xlu0 %v659, 88
        %v723 = vpop.permute.xlu0 %722
        %v724 = vsel %vm436, %v719, %v721
        %v725 = vsel %vm436, %v721, %v723
        %729 = vrot.lane.b32.xlu0 %v657, 87
        %v730 = vpop.permute.xlu0 %729
        %731 = vrot.lane.b32.xlu0 %v658, 87
        %v732 = vpop.permute.xlu0 %731
        %733 = vrot.lane.b32.xlu0 %v659, 87
        %v734 = vpop.permute.xlu0 %733
        %v735 = vsel %vm451, %v730, %v732
        %v736 = vsel %vm451, %v732, %v734
        %740 = vrot.lane.b32.xlu0 %v657, 86
        %v741 = vpop.permute.xlu0 %740
        %742 = vrot.lane.b32.xlu0 %v658, 86
        %v743 = vpop.permute.xlu0 %742
        %744 = vrot.lane.b32.xlu0 %v659, 86
        %v745 = vpop.permute.xlu0 %744
        %v746 = vsel %vm466, %v741, %v743
        %v747 = vsel %vm466, %v743, %v745
        %v751 = vld [vmem:[%s4] sm:$0xff]
        %v753 = vsel %vm474, %v751, 0
        %755 = vmatprep.subr.mxu0 0.0
        %756 = vmatpush1.msra.mxu0 0.0
        %757 = vmatprep.subr.mxu0 0.0
        %758 = vmatpush1.msra.mxu0 0.0
        %759 = vmatprep.subr.mxu0 0.0
        %760 = vmatpush1.msra.mxu0 0.0
        %761 = vmatprep.subr.mxu0 0.0
        %762 = vmatpush1.msra.mxu0 0.0
        %763 = vmatprep.subr.mxu0 0.0
        %764 = vmatpush1.msra.mxu0 0.0
        %765 = vmatprep.subr.mxu0 0.0
        %766 = vmatpush1.msra.mxu0 0.0
        %767 = vmatprep.subr.mxu0 0.0
        %768 = vmatpush1.msra.mxu0 0.0
        %769 = vmatprep.subr.mxu0 %v747
        %770 = vmatpush1.msra.mxu0 %v746
        %771 = vmatprep.subr.mxu0 %v736
        %772 = vmatpush1.msra.mxu0 %v735
        %773 = vmatprep.subr.mxu0 %v725
        %774 = vmatpush1.msra.mxu0 %v724
        %775 = vmatprep.subr.mxu0 %v714
        %776 = vmatpush1.msra.mxu0 %v713
        %777 = vmatprep.subr.mxu0 %v703
        %778 = vmatpush1.msra.mxu0 %v702
        %779 = vmatprep.subr.mxu0 %v692
        %780 = vmatpush1.msra.mxu0 %v691
        %781 = vmatprep.subr.mxu0 %v681
        %782 = vmatpush1.msra.mxu0 %v680
        %783 = vmatprep.subr.mxu0 %v670
        %784 = vmatpush1.msra.mxu0 %v669
        %785 = vmatprep.subr.mxu0 %v658
        %786 = vmatpush1.msra.mxu0 %v657
        %787 = vmatprep.subr.mxu0 0.0
        %788 = vmatpush2.msra.mxu0 0.0
        %789 = vmatprep.subr.mxu0 0.0
        %790 = vmatpush2.msra.mxu0 0.0
        %791 = vmatprep.subr.mxu0 0.0
        %792 = vmatpush2.msra.mxu0 0.0
        %793 = vmatprep.subr.mxu0 0.0
        %794 = vmatpush2.msra.mxu0 0.0
        %795 = vmatprep.subr.mxu0 0.0
        %796 = vmatpush2.msra.mxu0 0.0
        %797 = vmatprep.subr.mxu0 0.0
        %798 = vmatpush2.msra.mxu0 0.0
        %799 = vmatprep.subr.mxu0 0.0
        %800 = vmatpush2.msra.mxu0 0.0
        %801 = vmatprep.subr.mxu0 0.0
        %802 = vmatpush2.msra.mxu0 0.0
        %803 = vmatprep.subr.mxu0 0.0
        %804 = vmatpush2.msra.mxu0 0.0
        %805 = vmatprep.subr.mxu0 0.0
        %806 = vmatpush2.msra.mxu0 0.0
        %807 = vmatprep.subr.mxu0 0.0
        %808 = vmatpush2.msra.mxu0 0.0
        %809 = vmatprep.subr.mxu0 0.0
        %810 = vmatpush2.msra.mxu0 0.0
        %811 = vmatprep.subr.mxu0 0.0
        %812 = vmatpush2.msra.mxu0 0.0
        %813 = vmatprep.subr.mxu0 0.0
        %814 = vmatpush2.msra.mxu0 0.0
        %815 = vmatprep.subr.mxu0 0.0
        %816 = vmatpush2.msra.mxu0 0.0
        %817 = vmatprep.subr.mxu0 0.0
        %818 = vmatpush2.msra.mxu0 0.0
        %819 = vmatprep.mubr.f32.mxu0 0.0
        %820 = vmatmul.mubr.f32.gmra.mxu0 %v753
        %v821 = vpop.f32.mrf.mxu0
        %v822 = vadd.f32 0.0, %v821
        %v823 = vpop.f32.mrf.mxu0
        %v824 = vadd.f32 0.0, %v823
        %825 = vdwg.mxu0
        %826 = vmatprep.subr.mxu0 0.0
        %827 = vmatpush1.msra.mxu0 0.0
        %828 = vmatprep.subr.mxu0 0.0
        %829 = vmatpush1.msra.mxu0 0.0
        %830 = vmatprep.subr.mxu0 0.0
        %831 = vmatpush1.msra.mxu0 0.0
        %832 = vmatprep.subr.mxu0 0.0
        %833 = vmatpush1.msra.mxu0 0.0
        %834 = vmatprep.subr.mxu0 0.0
        %835 = vmatpush1.msra.mxu0 0.0
        %836 = vmatprep.subr.mxu0 0.0
        %837 = vmatpush1.msra.mxu0 0.0
        %838 = vmatprep.subr.mxu0 0.0
        %839 = vmatpush1.msra.mxu0 0.0
        %840 = vmatprep.subr.mxu0 0.0
        %841 = vmatpush1.msra.mxu0 %v745
        %842 = vmatprep.subr.mxu0 0.0
        %843 = vmatpush1.msra.mxu0 %v734
        %844 = vmatprep.subr.mxu0 0.0
        %845 = vmatpush1.msra.mxu0 %v723
        %846 = vmatprep.subr.mxu0 0.0
        %847 = vmatpush1.msra.mxu0 %v712
        %848 = vmatprep.subr.mxu0 0.0
        %849 = vmatpush1.msra.mxu0 %v701
        %850 = vmatprep.subr.mxu0 0.0
        %851 = vmatpush1.msra.mxu0 %v690
        %852 = vmatprep.subr.mxu0 0.0
        %853 = vmatpush1.msra.mxu0 %v679
        %854 = vmatprep.subr.mxu0 0.0
        %855 = vmatpush1.msra.mxu0 %v668
        %856 = vmatprep.subr.mxu0 0.0
        %857 = vmatpush1.msra.mxu0 %v659
        %858 = vmatprep.subr.mxu0 0.0
        %859 = vmatpush2.msra.mxu0 0.0
        %860 = vmatprep.subr.mxu0 0.0
        %861 = vmatpush2.msra.mxu0 0.0
        %862 = vmatprep.subr.mxu0 0.0
        %863 = vmatpush2.msra.mxu0 0.0
        %864 = vmatprep.subr.mxu0 0.0
        %865 = vmatpush2.msra.mxu0 0.0
        %866 = vmatprep.subr.mxu0 0.0
        %867 = vmatpush2.msra.mxu0 0.0
        %868 = vmatprep.subr.mxu0 0.0
        %869 = vmatpush2.msra.mxu0 0.0
        %870 = vmatprep.subr.mxu0 0.0
        %871 = vmatpush2.msra.mxu0 0.0
        %872 = vmatprep.subr.mxu0 0.0
        %873 = vmatpush2.msra.mxu0 0.0
        %874 = vmatprep.subr.mxu0 0.0
        %875 = vmatpush2.msra.mxu0 0.0
        %876 = vmatprep.subr.mxu0 0.0
        %877 = vmatpush2.msra.mxu0 0.0
        %878 = vmatprep.subr.mxu0 0.0
        %879 = vmatpush2.msra.mxu0 0.0
        %880 = vmatprep.subr.mxu0 0.0
        %881 = vmatpush2.msra.mxu0 0.0
        %882 = vmatprep.subr.mxu0 0.0
        %883 = vmatpush2.msra.mxu0 0.0
        %884 = vmatprep.subr.mxu0 0.0
        %885 = vmatpush2.msra.mxu0 0.0
        %886 = vmatprep.subr.mxu0 0.0
        %887 = vmatpush2.msra.mxu0 0.0
        %888 = vmatprep.subr.mxu0 0.0
        %889 = vmatpush2.msra.mxu0 0.0
        %890 = vmatprep.mubr.f32.mxu0 0.0
        %891 = vmatmul.mubr.f32.gmra.mxu0 %v753
        %v892 = vpop.f32.mrf.mxu0
        %v893 = vadd.f32 0.0, %v892
        %v894 = vpop.f32.mrf.mxu0
        %895 = vdwg.mxu0
        %v896 = vld [vmem:[%s5] sm:$0xff]
        %898 = vset.pattern.permute.xlu0 0
        %899 = vperm.xlu0 %898, %v896
        %v900 = vpop.permute.xlu0 %899
        %v902 = vmul.f32 %v822, %v900
        %v903 = vmul.f32 %v824, %v900
        %v904 = vmul.f32 %v893, %v900
        %v905 = vld [vmem:[%s6] sm:$0xff]
        %907 = vset.pattern.permute.xlu0 0
        %908 = vperm.xlu0 %907, %v905
        %v909 = vpop.permute.xlu0 %908
        %v911 = vadd.f32 %v902, %v909
        %v912 = vadd.f32 %v903, %v909
        %v913 = vadd.f32 %v904, %v909
        %v914 = vmax.f32 %v911, 0.0
        %v915 = vmax.f32 %v912, 0.0
        %v916 = vmax.f32 %v913, 0.0
        %918 = vrot.lane.b32.xlu0 %v914, 124
        %v919 = vpop.permute.xlu0 %918
        %921 = vrot.lane.b32.xlu0 %v914, 120
        %v922 = vpop.permute.xlu0 %921
        %924 = vrot.lane.b32.xlu0 %v914, 116
        %v925 = vpop.permute.xlu0 %924
        %927 = vrot.lane.b32.xlu0 %v914, 112
        %v928 = vpop.permute.xlu0 %927
        %930 = vrot.lane.b32.xlu0 %v914, 108
        %v931 = vpop.permute.xlu0 %930
        %934 = vrot.lane.b32.xlu0 %v914, 104
        %v935 = vpop.permute.xlu0 %934
        %936 = vrot.lane.b32.xlu0 %v915, 104
        %v937 = vpop.permute.xlu0 %936
        %vm938 = vcmask 850944
        %v939 = vsel %vm938, %v935, %v937
        %941 = vrot.lane.b32.xlu0 %v915, 100
        %v942 = vpop.permute.xlu0 %941
        %944 = vrot.lane.b32.xlu0 %v915, 96
        %v945 = vpop.permute.xlu0 %944
        %947 = vrot.lane.b32.xlu0 %v915, 92
        %v948 = vpop.permute.xlu0 %947
        %950 = vrot.lane.b32.xlu0 %v915, 88
        %v951 = vpop.permute.xlu0 %950
        %953 = vrot.lane.b32.xlu0 %v915, 84
        %v954 = vpop.permute.xlu0 %953
        %956 = vrot.lane.b32.xlu0 %v915, 80
        %v957 = vpop.permute.xlu0 %956
        %960 = vrot.lane.b32.xlu0 %v916, 76
        %v961 = vpop.permute.xlu0 %960
        %963 = vrot.lane.b32.xlu0 %v916, 72
        %v964 = vpop.permute.xlu0 %963
        %966 = vrot.lane.b32.xlu0 %v916, 68
        %v967 = vpop.permute.xlu0 %966
        %vm969 = vcmask 130048
        %v970 = vsel %vm969, %v914, %v919
        %vm971 = vcmask 261120
        %v972 = vsel %vm971, %v970, %v922
        %vm973 = vcmask 392192
        %v974 = vsel %vm973, %v972, %v925
        %vm975 = vcmask 523264
        %v976 = vsel %vm975, %v974, %v928
        %vm977 = vcmask 654336
        %v978 = vsel %vm977, %v976, %v931
        %vm979 = vcmask 785408
        %v980 = vsel %vm979, %v978, %v939
        %vm981 = vcmask 916480
        %v982 = vsel %vm981, %v980, %v942
        %v983 = vsel %vm969, %v945, %v948
        %v984 = vsel %vm971, %v983, %v951
        %v985 = vsel %vm973, %v984, %v954
        %v986 = vsel %vm975, %v985, %v957
        %v987 = vsel %vm977, %v986, %v961
        %v988 = vsel %vm979, %v987, %v964
        %v989 = vsel %vm981, %v988, %v967
        %990 = vst [vmem:[%s352] sm:$0xff] %v982
        %991 = vst [vmem:[%s352 + $0x8] sm:$0xff] %v989
        %992 = vrot.lane.b32.xlu0 %v915, 108
        %v993 = vpop.permute.xlu0 %992
        %994 = vrot.lane.b32.xlu0 %v916, 108
        %v995 = vpop.permute.xlu0 %994
        %v996 = vsel %vm397, %v931, %v993
        %v997 = vsel %vm397, %v993, %v995
        %v1001 = vmax.f32 %v914, %v996
        %v1002 = vmax.f32 %v915, %v997
        %v1003 = vmax.f32 %v916, %v995
        %1007 = vrot.lane.b32.xlu0 %v1001, 127
        %v1008 = vpop.permute.xlu0 %1007
        %1009 = vrot.lane.b32.xlu0 %v1002, 127
        %v1010 = vpop.permute.xlu0 %1009
        %1011 = vrot.lane.b32.xlu0 %v1003, 127
        %v1012 = vpop.permute.xlu0 %1011
        %v1013 = vsel %vm373, %v1008, %v1010
        %v1014 = vsel %vm373, %v1010, %v1012
        %v1018 = vmax.f32 %v1001, %v1013
        %v1019 = vmax.f32 %v1002, %v1014
        %v1020 = vmax.f32 %v1003, %v1012
        %v1021 = vlaneseq
        %v1022 = vshrl.u32 %v1021, 7
        %v1023 = vadd.s32 %v1022, 8
        %v1024 = vlaneseq
        %v1025 = vand.u32 %v1024, 127
        %v1026 = vmul.u32 %v1025, 2
        %vm1027 = vcmp.eq.s32.totalorder %v1022, %v1026
        %vm1028 = vcmp.eq.s32.totalorder %v1023, %v1026
        %v1029 = vsel %vm1027, 1, 0
        %v1030 = vsel %vm1028, 1, 0
        %v1031 = vcvt.s32.f32 %v1029
        %v1032 = vcvt.s32.f32 %v1030
        %v1034 = vsel %vm969, %v1018, 0
        %1036 = vmatprep.subr.mxu0 0.0
        %1037 = vmatpush1.msra.mxu0 0.0
        %1038 = vmatprep.subr.mxu0 0.0
        %1039 = vmatpush1.msra.mxu0 0.0
        %1040 = vmatprep.subr.mxu0 0.0
        %1041 = vmatpush1.msra.mxu0 0.0
        %1042 = vmatprep.subr.mxu0 0.0
        %1043 = vmatpush1.msra.mxu0 0.0
        %1044 = vmatprep.subr.mxu0 0.0
        %1045 = vmatpush1.msra.mxu0 0.0
        %1046 = vmatprep.subr.mxu0 0.0
        %1047 = vmatpush1.msra.mxu0 0.0
        %1048 = vmatprep.subr.mxu0 0.0
        %1049 = vmatpush1.msra.mxu0 0.0
        %1050 = vmatprep.subr.mxu0 0.0
        %1051 = vmatpush1.msra.mxu0 0.0
        %1052 = vmatprep.subr.mxu0 0.0
        %1053 = vmatpush1.msra.mxu0 0.0
        %1054 = vmatprep.subr.mxu0 0.0
        %1055 = vmatpush1.msra.mxu0 0.0
        %1056 = vmatprep.subr.mxu0 0.0
        %1057 = vmatpush1.msra.mxu0 0.0
        %1058 = vmatprep.subr.mxu0 0.0
        %1059 = vmatpush1.msra.mxu0 0.0
        %1060 = vmatprep.subr.mxu0 0.0
        %1061 = vmatpush1.msra.mxu0 0.0
        %1062 = vmatprep.subr.mxu0 0.0
        %1063 = vmatpush1.msra.mxu0 0.0
        %1064 = vmatprep.subr.mxu0 0.0
        %1065 = vmatpush1.msra.mxu0 %v1032
        %1066 = vmatprep.subr.mxu0 0.0
        %1067 = vmatpush1.msra.mxu0 %v1031
        %1068 = vmatprep.subr.mxu0 0.0
        %1069 = vmatpush2.msra.mxu0 0.0
        %1070 = vmatprep.subr.mxu0 0.0
        %1071 = vmatpush2.msra.mxu0 0.0
        %1072 = vmatprep.subr.mxu0 0.0
        %1073 = vmatpush2.msra.mxu0 0.0
        %1074 = vmatprep.subr.mxu0 0.0
        %1075 = vmatpush2.msra.mxu0 0.0
        %1076 = vmatprep.subr.mxu0 0.0
        %1077 = vmatpush2.msra.mxu0 0.0
        %1078 = vmatprep.subr.mxu0 0.0
        %1079 = vmatpush2.msra.mxu0 0.0
        %1080 = vmatprep.subr.mxu0 0.0
        %1081 = vmatpush2.msra.mxu0 0.0
        %1082 = vmatprep.subr.mxu0 0.0
        %1083 = vmatpush2.msra.mxu0 0.0
        %1084 = vmatprep.subr.mxu0 0.0
        %1085 = vmatpush2.msra.mxu0 0.0
        %1086 = vmatprep.subr.mxu0 0.0
        %1087 = vmatpush2.msra.mxu0 0.0
        %1088 = vmatprep.subr.mxu0 0.0
        %1089 = vmatpush2.msra.mxu0 0.0
        %1090 = vmatprep.subr.mxu0 0.0
        %1091 = vmatpush2.msra.mxu0 0.0
        %1092 = vmatprep.subr.mxu0 0.0
        %1093 = vmatpush2.msra.mxu0 0.0
        %1094 = vmatprep.subr.mxu0 0.0
        %1095 = vmatpush2.msra.mxu0 0.0
        %1096 = vmatprep.subr.mxu0 0.0
        %1097 = vmatpush2.msra.mxu0 0.0
        %1098 = vmatprep.subr.mxu0 0.0
        %1099 = vmatpush2.msra.mxu0 0.0
        %1100 = vmatprep.mubr.f32.mxu0 0.0
        %1101 = vmatmul.mubr.f32.gmra.mxu0 %v1034
        %v1102 = vpop.f32.mrf.mxu0
        %v1103 = vadd.f32 0.0, %v1102
        %v1104 = vpop.f32.mrf.mxu0
        %1105 = vdwg.mxu0
        %1106 = vrot.lane.b32.xlu0 %v1018, 88
        %v1107 = vpop.permute.xlu0 %1106
        %v1108 = vsel %vm969, %v1107, 0
        %1110 = vmatprep.subr.mxu0 0.0
        %1111 = vmatpush1.msra.mxu0 0.0
        %1112 = vmatprep.subr.mxu0 0.0
        %1113 = vmatpush1.msra.mxu0 0.0
        %1114 = vmatprep.subr.mxu0 0.0
        %1115 = vmatpush1.msra.mxu0 0.0
        %1116 = vmatprep.subr.mxu0 0.0
        %1117 = vmatpush1.msra.mxu0 0.0
        %1118 = vmatprep.subr.mxu0 0.0
        %1119 = vmatpush1.msra.mxu0 0.0
        %1120 = vmatprep.subr.mxu0 0.0
        %1121 = vmatpush1.msra.mxu0 0.0
        %1122 = vmatprep.subr.mxu0 0.0
        %1123 = vmatpush1.msra.mxu0 0.0
        %1124 = vmatprep.subr.mxu0 0.0
        %1125 = vmatpush1.msra.mxu0 0.0
        %1126 = vmatprep.subr.mxu0 0.0
        %1127 = vmatpush1.msra.mxu0 0.0
        %1128 = vmatprep.subr.mxu0 0.0
        %1129 = vmatpush1.msra.mxu0 0.0
        %1130 = vmatprep.subr.mxu0 0.0
        %1131 = vmatpush1.msra.mxu0 0.0
        %1132 = vmatprep.subr.mxu0 0.0
        %1133 = vmatpush1.msra.mxu0 0.0
        %1134 = vmatprep.subr.mxu0 0.0
        %1135 = vmatpush1.msra.mxu0 0.0
        %1136 = vmatprep.subr.mxu0 0.0
        %1137 = vmatpush1.msra.mxu0 0.0
        %1138 = vmatprep.subr.mxu0 0.0
        %1139 = vmatpush1.msra.mxu0 %v1032
        %1140 = vmatprep.subr.mxu0 0.0
        %1141 = vmatpush1.msra.mxu0 %v1031
        %1142 = vmatprep.subr.mxu0 0.0
        %1143 = vmatpush2.msra.mxu0 0.0
        %1144 = vmatprep.subr.mxu0 0.0
        %1145 = vmatpush2.msra.mxu0 0.0
        %1146 = vmatprep.subr.mxu0 0.0
        %1147 = vmatpush2.msra.mxu0 0.0
        %1148 = vmatprep.subr.mxu0 0.0
        %1149 = vmatpush2.msra.mxu0 0.0
        %1150 = vmatprep.subr.mxu0 0.0
        %1151 = vmatpush2.msra.mxu0 0.0
        %1152 = vmatprep.subr.mxu0 0.0
        %1153 = vmatpush2.msra.mxu0 0.0
        %1154 = vmatprep.subr.mxu0 0.0
        %1155 = vmatpush2.msra.mxu0 0.0
        %1156 = vmatprep.subr.mxu0 0.0
        %1157 = vmatpush2.msra.mxu0 0.0
        %1158 = vmatprep.subr.mxu0 0.0
        %1159 = vmatpush2.msra.mxu0 0.0
        %1160 = vmatprep.subr.mxu0 0.0
        %1161 = vmatpush2.msra.mxu0 0.0
        %1162 = vmatprep.subr.mxu0 0.0
        %1163 = vmatpush2.msra.mxu0 0.0
        %1164 = vmatprep.subr.mxu0 0.0
        %1165 = vmatpush2.msra.mxu0 0.0
        %1166 = vmatprep.subr.mxu0 0.0
        %1167 = vmatpush2.msra.mxu0 0.0
        %1168 = vmatprep.subr.mxu0 0.0
        %1169 = vmatpush2.msra.mxu0 0.0
        %1170 = vmatprep.subr.mxu0 0.0
        %1171 = vmatpush2.msra.mxu0 0.0
        %1172 = vmatprep.subr.mxu0 0.0
        %1173 = vmatpush2.msra.mxu0 0.0
        %1174 = vmatprep.mubr.f32.mxu0 0.0
        %1175 = vmatmul.mubr.f32.gmra.mxu0 %v1108
        %v1176 = vpop.f32.mrf.mxu0
        %v1177 = vadd.f32 0.0, %v1176
        %v1178 = vpop.f32.mrf.mxu0
        %1179 = vdwg.mxu0
        %1180 = vrot.lane.b32.xlu0 %v1018, 48
        %v1181 = vpop.permute.xlu0 %1180
        %v1182 = vsel %vm969, %v1181, 0
        %1184 = vmatprep.subr.mxu0 0.0
        %1185 = vmatpush1.msra.mxu0 0.0
        %1186 = vmatprep.subr.mxu0 0.0
        %1187 = vmatpush1.msra.mxu0 0.0
        %1188 = vmatprep.subr.mxu0 0.0
        %1189 = vmatpush1.msra.mxu0 0.0
        %1190 = vmatprep.subr.mxu0 0.0
        %1191 = vmatpush1.msra.mxu0 0.0
        %1192 = vmatprep.subr.mxu0 0.0
        %1193 = vmatpush1.msra.mxu0 0.0
        %1194 = vmatprep.subr.mxu0 0.0
        %1195 = vmatpush1.msra.mxu0 0.0
        %1196 = vmatprep.subr.mxu0 0.0
        %1197 = vmatpush1.msra.mxu0 0.0
        %1198 = vmatprep.subr.mxu0 0.0
        %1199 = vmatpush1.msra.mxu0 0.0
        %1200 = vmatprep.subr.mxu0 0.0
        %1201 = vmatpush1.msra.mxu0 0.0
        %1202 = vmatprep.subr.mxu0 0.0
        %1203 = vmatpush1.msra.mxu0 0.0
        %1204 = vmatprep.subr.mxu0 0.0
        %1205 = vmatpush1.msra.mxu0 0.0
        %1206 = vmatprep.subr.mxu0 0.0
        %1207 = vmatpush1.msra.mxu0 0.0
        %1208 = vmatprep.subr.mxu0 0.0
        %1209 = vmatpush1.msra.mxu0 0.0
        %1210 = vmatprep.subr.mxu0 0.0
        %1211 = vmatpush1.msra.mxu0 0.0
        %1212 = vmatprep.subr.mxu0 0.0
        %1213 = vmatpush1.msra.mxu0 %v1032
        %1214 = vmatprep.subr.mxu0 0.0
        %1215 = vmatpush1.msra.mxu0 %v1031
        %1216 = vmatprep.subr.mxu0 0.0
        %1217 = vmatpush2.msra.mxu0 0.0
        %1218 = vmatprep.subr.mxu0 0.0
        %1219 = vmatpush2.msra.mxu0 0.0
        %1220 = vmatprep.subr.mxu0 0.0
        %1221 = vmatpush2.msra.mxu0 0.0
        %1222 = vmatprep.subr.mxu0 0.0
        %1223 = vmatpush2.msra.mxu0 0.0
        %1224 = vmatprep.subr.mxu0 0.0
        %1225 = vmatpush2.msra.mxu0 0.0
        %1226 = vmatprep.subr.mxu0 0.0
        %1227 = vmatpush2.msra.mxu0 0.0
        %1228 = vmatprep.subr.mxu0 0.0
        %1229 = vmatpush2.msra.mxu0 0.0
        %1230 = vmatprep.subr.mxu0 0.0
        %1231 = vmatpush2.msra.mxu0 0.0
        %1232 = vmatprep.subr.mxu0 0.0
        %1233 = vmatpush2.msra.mxu0 0.0
        %1234 = vmatprep.subr.mxu0 0.0
        %1235 = vmatpush2.msra.mxu0 0.0
        %1236 = vmatprep.subr.mxu0 0.0
        %1237 = vmatpush2.msra.mxu0 0.0
        %1238 = vmatprep.subr.mxu0 0.0
        %1239 = vmatpush2.msra.mxu0 0.0
        %1240 = vmatprep.subr.mxu0 0.0
        %1241 = vmatpush2.msra.mxu0 0.0
        %1242 = vmatprep.subr.mxu0 0.0
        %1243 = vmatpush2.msra.mxu0 0.0
        %1244 = vmatprep.subr.mxu0 0.0
        %1245 = vmatpush2.msra.mxu0 0.0
        %1246 = vmatprep.subr.mxu0 0.0
        %1247 = vmatpush2.msra.mxu0 0.0
        %1248 = vmatprep.mubr.f32.mxu0 0.0
        %1249 = vmatmul.mubr.f32.gmra.mxu0 %v1182
        %v1250 = vpop.f32.mrf.mxu0
        %v1251 = vadd.f32 0.0, %v1250
        %v1252 = vpop.f32.mrf.mxu0
        %1253 = vdwg.mxu0
        %1255 = vrot.lane.b32.xlu0 %v1018, 8
        %v1256 = vpop.permute.xlu0 %1255
        %1257 = vrot.lane.b32.xlu0 %v1019, 8
        %v1258 = vpop.permute.xlu0 %1257
        %vm1259 = vcmask 64512
        %v1260 = vsel %vm1259, %v1256, %v1258
        %v1261 = vsel %vm969, %v1260, 0
        %1263 = vmatprep.subr.mxu0 0.0
        %1264 = vmatpush1.msra.mxu0 0.0
        %1265 = vmatprep.subr.mxu0 0.0
        %1266 = vmatpush1.msra.mxu0 0.0
        %1267 = vmatprep.subr.mxu0 0.0
        %1268 = vmatpush1.msra.mxu0 0.0
        %1269 = vmatprep.subr.mxu0 0.0
        %1270 = vmatpush1.msra.mxu0 0.0
        %1271 = vmatprep.subr.mxu0 0.0
        %1272 = vmatpush1.msra.mxu0 0.0
        %1273 = vmatprep.subr.mxu0 0.0
        %1274 = vmatpush1.msra.mxu0 0.0
        %1275 = vmatprep.subr.mxu0 0.0
        %1276 = vmatpush1.msra.mxu0 0.0
        %1277 = vmatprep.subr.mxu0 0.0
        %1278 = vmatpush1.msra.mxu0 0.0
        %1279 = vmatprep.subr.mxu0 0.0
        %1280 = vmatpush1.msra.mxu0 0.0
        %1281 = vmatprep.subr.mxu0 0.0
        %1282 = vmatpush1.msra.mxu0 0.0
        %1283 = vmatprep.subr.mxu0 0.0
        %1284 = vmatpush1.msra.mxu0 0.0
        %1285 = vmatprep.subr.mxu0 0.0
        %1286 = vmatpush1.msra.mxu0 0.0
        %1287 = vmatprep.subr.mxu0 0.0
        %1288 = vmatpush1.msra.mxu0 0.0
        %1289 = vmatprep.subr.mxu0 0.0
        %1290 = vmatpush1.msra.mxu0 0.0
        %1291 = vmatprep.subr.mxu0 0.0
        %1292 = vmatpush1.msra.mxu0 %v1032
        %1293 = vmatprep.subr.mxu0 0.0
        %1294 = vmatpush1.msra.mxu0 %v1031
        %1295 = vmatprep.subr.mxu0 0.0
        %1296 = vmatpush2.msra.mxu0 0.0
        %1297 = vmatprep.subr.mxu0 0.0
        %1298 = vmatpush2.msra.mxu0 0.0
        %1299 = vmatprep.subr.mxu0 0.0
        %1300 = vmatpush2.msra.mxu0 0.0
        %1301 = vmatprep.subr.mxu0 0.0
        %1302 = vmatpush2.msra.mxu0 0.0
        %1303 = vmatprep.subr.mxu0 0.0
        %1304 = vmatpush2.msra.mxu0 0.0
        %1305 = vmatprep.subr.mxu0 0.0
        %1306 = vmatpush2.msra.mxu0 0.0
        %1307 = vmatprep.subr.mxu0 0.0
        %1308 = vmatpush2.msra.mxu0 0.0
        %1309 = vmatprep.subr.mxu0 0.0
        %1310 = vmatpush2.msra.mxu0 0.0
        %1311 = vmatprep.subr.mxu0 0.0
        %1312 = vmatpush2.msra.mxu0 0.0
        %1313 = vmatprep.subr.mxu0 0.0
        %1314 = vmatpush2.msra.mxu0 0.0
        %1315 = vmatprep.subr.mxu0 0.0
        %1316 = vmatpush2.msra.mxu0 0.0
        %1317 = vmatprep.subr.mxu0 0.0
        %1318 = vmatpush2.msra.mxu0 0.0
        %1319 = vmatprep.subr.mxu0 0.0
        %1320 = vmatpush2.msra.mxu0 0.0
        %1321 = vmatprep.subr.mxu0 0.0
        %1322 = vmatpush2.msra.mxu0 0.0
        %1323 = vmatprep.subr.mxu0 0.0
        %1324 = vmatpush2.msra.mxu0 0.0
        %1325 = vmatprep.subr.mxu0 0.0
        %1326 = vmatpush2.msra.mxu0 0.0
        %1327 = vmatprep.mubr.f32.mxu0 0.0
        %1328 = vmatmul.mubr.f32.gmra.mxu0 %v1261
        %v1329 = vpop.f32.mrf.mxu0
        %v1330 = vadd.f32 0.0, %v1329
        %v1331 = vpop.f32.mrf.mxu0
        %1332 = vdwg.mxu0
        %1333 = vrot.lane.b32.xlu0 %v1019, 96
        %v1334 = vpop.permute.xlu0 %1333
        %v1335 = vsel %vm969, %v1334, 0
        %1337 = vmatprep.subr.mxu0 0.0
        %1338 = vmatpush1.msra.mxu0 0.0
        %1339 = vmatprep.subr.mxu0 0.0
        %1340 = vmatpush1.msra.mxu0 0.0
        %1341 = vmatprep.subr.mxu0 0.0
        %1342 = vmatpush1.msra.mxu0 0.0
        %1343 = vmatprep.subr.mxu0 0.0
        %1344 = vmatpush1.msra.mxu0 0.0
        %1345 = vmatprep.subr.mxu0 0.0
        %1346 = vmatpush1.msra.mxu0 0.0
        %1347 = vmatprep.subr.mxu0 0.0
        %1348 = vmatpush1.msra.mxu0 0.0
        %1349 = vmatprep.subr.mxu0 0.0
        %1350 = vmatpush1.msra.mxu0 0.0
        %1351 = vmatprep.subr.mxu0 0.0
        %1352 = vmatpush1.msra.mxu0 0.0
        %1353 = vmatprep.subr.mxu0 0.0
        %1354 = vmatpush1.msra.mxu0 0.0
        %1355 = vmatprep.subr.mxu0 0.0
        %1356 = vmatpush1.msra.mxu0 0.0
        %1357 = vmatprep.subr.mxu0 0.0
        %1358 = vmatpush1.msra.mxu0 0.0
        %1359 = vmatprep.subr.mxu0 0.0
        %1360 = vmatpush1.msra.mxu0 0.0
        %1361 = vmatprep.subr.mxu0 0.0
        %1362 = vmatpush1.msra.mxu0 0.0
        %1363 = vmatprep.subr.mxu0 0.0
        %1364 = vmatpush1.msra.mxu0 0.0
        %1365 = vmatprep.subr.mxu0 0.0
        %1366 = vmatpush1.msra.mxu0 %v1032
        %1367 = vmatprep.subr.mxu0 0.0
        %1368 = vmatpush1.msra.mxu0 %v1031
        %1369 = vmatprep.subr.mxu0 0.0
        %1370 = vmatpush2.msra.mxu0 0.0
        %1371 = vmatprep.subr.mxu0 0.0
        %1372 = vmatpush2.msra.mxu0 0.0
        %1373 = vmatprep.subr.mxu0 0.0
        %1374 = vmatpush2.msra.mxu0 0.0
        %1375 = vmatprep.subr.mxu0 0.0
        %1376 = vmatpush2.msra.mxu0 0.0
        %1377 = vmatprep.subr.mxu0 0.0
        %1378 = vmatpush2.msra.mxu0 0.0
        %1379 = vmatprep.subr.mxu0 0.0
        %1380 = vmatpush2.msra.mxu0 0.0
        %1381 = vmatprep.subr.mxu0 0.0
        %1382 = vmatpush2.msra.mxu0 0.0
        %1383 = vmatprep.subr.mxu0 0.0
        %1384 = vmatpush2.msra.mxu0 0.0
        %1385 = vmatprep.subr.mxu0 0.0
        %1386 = vmatpush2.msra.mxu0 0.0
        %1387 = vmatprep.subr.mxu0 0.0
        %1388 = vmatpush2.msra.mxu0 0.0
        %1389 = vmatprep.subr.mxu0 0.0
        %1390 = vmatpush2.msra.mxu0 0.0
        %1391 = vmatprep.subr.mxu0 0.0
        %1392 = vmatpush2.msra.mxu0 0.0
        %1393 = vmatprep.subr.mxu0 0.0
        %1394 = vmatpush2.msra.mxu0 0.0
        %1395 = vmatprep.subr.mxu0 0.0
        %1396 = vmatpush2.msra.mxu0 0.0
        %1397 = vmatprep.subr.mxu0 0.0
        %1398 = vmatpush2.msra.mxu0 0.0
        %1399 = vmatprep.subr.mxu0 0.0
        %1400 = vmatpush2.msra.mxu0 0.0
        %1401 = vmatprep.mubr.f32.mxu0 0.0
        %1402 = vmatmul.mubr.f32.gmra.mxu0 %v1335
        %v1403 = vpop.f32.mrf.mxu0
        %v1404 = vadd.f32 0.0, %v1403
        %v1405 = vpop.f32.mrf.mxu0
        %1406 = vdwg.mxu0
        %1407 = vrot.lane.b32.xlu0 %v1019, 56
        %v1408 = vpop.permute.xlu0 %1407
        %v1409 = vsel %vm969, %v1408, 0
        %1411 = vmatprep.subr.mxu0 0.0
        %1412 = vmatpush1.msra.mxu0 0.0
        %1413 = vmatprep.subr.mxu0 0.0
        %1414 = vmatpush1.msra.mxu0 0.0
        %1415 = vmatprep.subr.mxu0 0.0
        %1416 = vmatpush1.msra.mxu0 0.0
        %1417 = vmatprep.subr.mxu0 0.0
        %1418 = vmatpush1.msra.mxu0 0.0
        %1419 = vmatprep.subr.mxu0 0.0
        %1420 = vmatpush1.msra.mxu0 0.0
        %1421 = vmatprep.subr.mxu0 0.0
        %1422 = vmatpush1.msra.mxu0 0.0
        %1423 = vmatprep.subr.mxu0 0.0
        %1424 = vmatpush1.msra.mxu0 0.0
        %1425 = vmatprep.subr.mxu0 0.0
        %1426 = vmatpush1.msra.mxu0 0.0
        %1427 = vmatprep.subr.mxu0 0.0
        %1428 = vmatpush1.msra.mxu0 0.0
        %1429 = vmatprep.subr.mxu0 0.0
        %1430 = vmatpush1.msra.mxu0 0.0
        %1431 = vmatprep.subr.mxu0 0.0
        %1432 = vmatpush1.msra.mxu0 0.0
        %1433 = vmatprep.subr.mxu0 0.0
        %1434 = vmatpush1.msra.mxu0 0.0
        %1435 = vmatprep.subr.mxu0 0.0
        %1436 = vmatpush1.msra.mxu0 0.0
        %1437 = vmatprep.subr.mxu0 0.0
        %1438 = vmatpush1.msra.mxu0 0.0
        %1439 = vmatprep.subr.mxu0 0.0
        %1440 = vmatpush1.msra.mxu0 %v1032
        %1441 = vmatprep.subr.mxu0 0.0
        %1442 = vmatpush1.msra.mxu0 %v1031
        %1443 = vmatprep.subr.mxu0 0.0
        %1444 = vmatpush2.msra.mxu0 0.0
        %1445 = vmatprep.subr.mxu0 0.0
        %1446 = vmatpush2.msra.mxu0 0.0
        %1447 = vmatprep.subr.mxu0 0.0
        %1448 = vmatpush2.msra.mxu0 0.0
        %1449 = vmatprep.subr.mxu0 0.0
        %1450 = vmatpush2.msra.mxu0 0.0
        %1451 = vmatprep.subr.mxu0 0.0
        %1452 = vmatpush2.msra.mxu0 0.0
        %1453 = vmatprep.subr.mxu0 0.0
        %1454 = vmatpush2.msra.mxu0 0.0
        %1455 = vmatprep.subr.mxu0 0.0
        %1456 = vmatpush2.msra.mxu0 0.0
        %1457 = vmatprep.subr.mxu0 0.0
        %1458 = vmatpush2.msra.mxu0 0.0
        %1459 = vmatprep.subr.mxu0 0.0
        %1460 = vmatpush2.msra.mxu0 0.0
        %1461 = vmatprep.subr.mxu0 0.0
        %1462 = vmatpush2.msra.mxu0 0.0
        %1463 = vmatprep.subr.mxu0 0.0
        %1464 = vmatpush2.msra.mxu0 0.0
        %1465 = vmatprep.subr.mxu0 0.0
        %1466 = vmatpush2.msra.mxu0 0.0
        %1467 = vmatprep.subr.mxu0 0.0
        %1468 = vmatpush2.msra.mxu0 0.0
        %1469 = vmatprep.subr.mxu0 0.0
        %1470 = vmatpush2.msra.mxu0 0.0
        %1471 = vmatprep.subr.mxu0 0.0
        %1472 = vmatpush2.msra.mxu0 0.0
        %1473 = vmatprep.subr.mxu0 0.0
        %1474 = vmatpush2.msra.mxu0 0.0
        %1475 = vmatprep.mubr.f32.mxu0 0.0
        %1476 = vmatmul.mubr.f32.gmra.mxu0 %v1409
        %v1477 = vpop.f32.mrf.mxu0
        %v1478 = vadd.f32 0.0, %v1477
        %v1479 = vpop.f32.mrf.mxu0
        %1480 = vdwg.mxu0
        %1481 = vrot.lane.b32.xlu0 %v1019, 16
        %v1482 = vpop.permute.xlu0 %1481
        %v1483 = vsel %vm969, %v1482, 0
        %1485 = vmatprep.subr.mxu0 0.0
        %1486 = vmatpush1.msra.mxu0 0.0
        %1487 = vmatprep.subr.mxu0 0.0
        %1488 = vmatpush1.msra.mxu0 0.0
        %1489 = vmatprep.subr.mxu0 0.0
        %1490 = vmatpush1.msra.mxu0 0.0
        %1491 = vmatprep.subr.mxu0 0.0
        %1492 = vmatpush1.msra.mxu0 0.0
        %1493 = vmatprep.subr.mxu0 0.0
        %1494 = vmatpush1.msra.mxu0 0.0
        %1495 = vmatprep.subr.mxu0 0.0
        %1496 = vmatpush1.msra.mxu0 0.0
        %1497 = vmatprep.subr.mxu0 0.0
        %1498 = vmatpush1.msra.mxu0 0.0
        %1499 = vmatprep.subr.mxu0 0.0
        %1500 = vmatpush1.msra.mxu0 0.0
        %1501 = vmatprep.subr.mxu0 0.0
        %1502 = vmatpush1.msra.mxu0 0.0
        %1503 = vmatprep.subr.mxu0 0.0
        %1504 = vmatpush1.msra.mxu0 0.0
        %1505 = vmatprep.subr.mxu0 0.0
        %1506 = vmatpush1.msra.mxu0 0.0
        %1507 = vmatprep.subr.mxu0 0.0
        %1508 = vmatpush1.msra.mxu0 0.0
        %1509 = vmatprep.subr.mxu0 0.0
        %1510 = vmatpush1.msra.mxu0 0.0
        %1511 = vmatprep.subr.mxu0 0.0
        %1512 = vmatpush1.msra.mxu0 0.0
        %1513 = vmatprep.subr.mxu0 0.0
        %1514 = vmatpush1.msra.mxu0 %v1032
        %1515 = vmatprep.subr.mxu0 0.0
        %1516 = vmatpush1.msra.mxu0 %v1031
        %1517 = vmatprep.subr.mxu0 0.0
        %1518 = vmatpush2.msra.mxu0 0.0
        %1519 = vmatprep.subr.mxu0 0.0
        %1520 = vmatpush2.msra.mxu0 0.0
        %1521 = vmatprep.subr.mxu0 0.0
        %1522 = vmatpush2.msra.mxu0 0.0
        %1523 = vmatprep.subr.mxu0 0.0
        %1524 = vmatpush2.msra.mxu0 0.0
        %1525 = vmatprep.subr.mxu0 0.0
        %1526 = vmatpush2.msra.mxu0 0.0
        %1527 = vmatprep.subr.mxu0 0.0
        %1528 = vmatpush2.msra.mxu0 0.0
        %1529 = vmatprep.subr.mxu0 0.0
        %1530 = vmatpush2.msra.mxu0 0.0
        %1531 = vmatprep.subr.mxu0 0.0
        %1532 = vmatpush2.msra.mxu0 0.0
        %1533 = vmatprep.subr.mxu0 0.0
        %1534 = vmatpush2.msra.mxu0 0.0
        %1535 = vmatprep.subr.mxu0 0.0
        %1536 = vmatpush2.msra.mxu0 0.0
        %1537 = vmatprep.subr.mxu0 0.0
        %1538 = vmatpush2.msra.mxu0 0.0
        %1539 = vmatprep.subr.mxu0 0.0
        %1540 = vmatpush2.msra.mxu0 0.0
        %1541 = vmatprep.subr.mxu0 0.0
        %1542 = vmatpush2.msra.mxu0 0.0
        %1543 = vmatprep.subr.mxu0 0.0
        %1544 = vmatpush2.msra.mxu0 0.0
        %1545 = vmatprep.subr.mxu0 0.0
        %1546 = vmatpush2.msra.mxu0 0.0
        %1547 = vmatprep.subr.mxu0 0.0
        %1548 = vmatpush2.msra.mxu0 0.0
        %1549 = vmatprep.mubr.f32.mxu0 0.0
        %1550 = vmatmul.mubr.f32.gmra.mxu0 %v1483
        %v1551 = vpop.f32.mrf.mxu0
        %v1552 = vadd.f32 0.0, %v1551
        %v1553 = vpop.f32.mrf.mxu0
        %1554 = vdwg.mxu0
        %1556 = vrot.lane.b32.xlu0 %v1020, 104
        %v1557 = vpop.permute.xlu0 %1556
        %v1558 = vsel %vm969, %v1557, 0
        %1560 = vmatprep.subr.mxu0 0.0
        %1561 = vmatpush1.msra.mxu0 0.0
        %1562 = vmatprep.subr.mxu0 0.0
        %1563 = vmatpush1.msra.mxu0 0.0
        %1564 = vmatprep.subr.mxu0 0.0
        %1565 = vmatpush1.msra.mxu0 0.0
        %1566 = vmatprep.subr.mxu0 0.0
        %1567 = vmatpush1.msra.mxu0 0.0
        %1568 = vmatprep.subr.mxu0 0.0
        %1569 = vmatpush1.msra.mxu0 0.0
        %1570 = vmatprep.subr.mxu0 0.0
        %1571 = vmatpush1.msra.mxu0 0.0
        %1572 = vmatprep.subr.mxu0 0.0
        %1573 = vmatpush1.msra.mxu0 0.0
        %1574 = vmatprep.subr.mxu0 0.0
        %1575 = vmatpush1.msra.mxu0 0.0
        %1576 = vmatprep.subr.mxu0 0.0
        %1577 = vmatpush1.msra.mxu0 0.0
        %1578 = vmatprep.subr.mxu0 0.0
        %1579 = vmatpush1.msra.mxu0 0.0
        %1580 = vmatprep.subr.mxu0 0.0
        %1581 = vmatpush1.msra.mxu0 0.0
        %1582 = vmatprep.subr.mxu0 0.0
        %1583 = vmatpush1.msra.mxu0 0.0
        %1584 = vmatprep.subr.mxu0 0.0
        %1585 = vmatpush1.msra.mxu0 0.0
        %1586 = vmatprep.subr.mxu0 0.0
        %1587 = vmatpush1.msra.mxu0 0.0
        %1588 = vmatprep.subr.mxu0 0.0
        %1589 = vmatpush1.msra.mxu0 %v1032
        %1590 = vmatprep.subr.mxu0 0.0
        %1591 = vmatpush1.msra.mxu0 %v1031
        %1592 = vmatprep.subr.mxu0 0.0
        %1593 = vmatpush2.msra.mxu0 0.0
        %1594 = vmatprep.subr.mxu0 0.0
        %1595 = vmatpush2.msra.mxu0 0.0
        %1596 = vmatprep.subr.mxu0 0.0
        %1597 = vmatpush2.msra.mxu0 0.0
        %1598 = vmatprep.subr.mxu0 0.0
        %1599 = vmatpush2.msra.mxu0 0.0
        %1600 = vmatprep.subr.mxu0 0.0
        %1601 = vmatpush2.msra.mxu0 0.0
        %1602 = vmatprep.subr.mxu0 0.0
        %1603 = vmatpush2.msra.mxu0 0.0
        %1604 = vmatprep.subr.mxu0 0.0
        %1605 = vmatpush2.msra.mxu0 0.0
        %1606 = vmatprep.subr.mxu0 0.0
        %1607 = vmatpush2.msra.mxu0 0.0
        %1608 = vmatprep.subr.mxu0 0.0
        %1609 = vmatpush2.msra.mxu0 0.0
        %1610 = vmatprep.subr.mxu0 0.0
        %1611 = vmatpush2.msra.mxu0 0.0
        %1612 = vmatprep.subr.mxu0 0.0
        %1613 = vmatpush2.msra.mxu0 0.0
        %1614 = vmatprep.subr.mxu0 0.0
        %1615 = vmatpush2.msra.mxu0 0.0
        %1616 = vmatprep.subr.mxu0 0.0
        %1617 = vmatpush2.msra.mxu0 0.0
        %1618 = vmatprep.subr.mxu0 0.0
        %1619 = vmatpush2.msra.mxu0 0.0
        %1620 = vmatprep.subr.mxu0 0.0
        %1621 = vmatpush2.msra.mxu0 0.0
        %1622 = vmatprep.subr.mxu0 0.0
        %1623 = vmatpush2.msra.mxu0 0.0
        %1624 = vmatprep.mubr.f32.mxu0 0.0
        %1625 = vmatmul.mubr.f32.gmra.mxu0 %v1558
        %v1626 = vpop.f32.mrf.mxu0
        %v1627 = vadd.f32 0.0, %v1626
        %v1628 = vpop.f32.mrf.mxu0
        %1629 = vdwg.mxu0
        %1631 = vrot.lane.b32.xlu0 %v1177, 8
        %v1632 = vpop.permute.xlu0 %1631
        %1635 = vrot.lane.b32.xlu0 %v1251, 16
        %v1636 = vpop.permute.xlu0 %1635
        %1639 = vrot.lane.b32.xlu0 %v1330, 24
        %v1640 = vpop.permute.xlu0 %1639
        %1643 = vrot.lane.b32.xlu0 %v1404, 32
        %v1644 = vpop.permute.xlu0 %1643
        %1647 = vrot.lane.b32.xlu0 %v1478, 40
        %v1648 = vpop.permute.xlu0 %1647
        %1651 = vrot.lane.b32.xlu0 %v1552, 48
        %v1652 = vpop.permute.xlu0 %1651
        %1655 = vrot.lane.b32.xlu0 %v1627, 56
        %v1656 = vpop.permute.xlu0 %1655
        %v1658 = vsel %vm1259, %v1103, %v1632
        %v1659 = vsel %vm969, %v1658, %v1636
        %vm1660 = vcmask 195584
        %v1661 = vsel %vm1660, %v1659, %v1640
        %v1662 = vsel %vm971, %v1661, %v1644
        %vm1663 = vcmask 326656
        %v1664 = vsel %vm1663, %v1662, %v1648
        %v1665 = vsel %vm973, %v1664, %v1652
        %vm1666 = vcmask 457728
        %v1667 = vsel %vm1666, %v1665, %v1656
        %1668 = vst.msk [vmem:[%s359] sm:$0xff] %vm975, %v1667
        %s1669 = sand.u32 %s211, 1
        %s1670 = scalar_lea.sflag [#allocation4], %s1669
        %s1671 = sand.u32 %s211, 1
        %s1672 = smul.addr %s1671, 16
        %s1673 = scalar_lea.vmem [#allocation5], %s1672
        %s1674 = sand.u32 %s237, 1
        %s1675 = scalar_lea.sflag [#allocation7], %s1674
        %s1676 = sand.u32 %s237, 1
        %s1677 = smul.addr %s1676, 8
        %s1678 = scalar_lea.vmem [#allocation6], %s1677
        // Predicated region
        $region57: #{tpu_custom_call.1} parent=51 // pred_check
          %p1679 = pneg %p221
        $region58: #{tpu_custom_call.1} parent=51 // pred_check_branch
          %1681 = sbr.rel (%p1679) target = $region60
        $region59: #{tpu_custom_call.1} parent=51 // pred_region
          %s1683 = ssub.s32 256, 256
          %1684 = vsyncadd %s1670, %s1683
          %s1685 = smul.addr %s30, 2
          %s1686 = smul.addr %s1685, 128
          %s1687 = scalar_lea.hbm %s8, %s1686
          %s1689 = sshll.u32 %s1673, 4
          %s1690 = int_to_ptr.vmem [resolvable:$true] %s1689
          %1692 = dma.vmem_to_hbm [thread:$0]  %s1690, 256, %s1687, %s1670
        $region60: #{tpu_custom_call.1} parent=51 // pred_fallthru
          _
        // Predicated region
        $region61: #{tpu_custom_call.1} parent=51 // pred_check
          %p1693 = pneg %p247
        $region62: #{tpu_custom_call.1} parent=51 // pred_check_branch
          %1695 = sbr.rel (%p1693) target = $region64
        $region63: #{tpu_custom_call.1} parent=51 // pred_region
          %s1697 = ssub.s32 128, 128
          %1698 = vsyncadd %s1675, %s1697
          %s1699 = smul.addr %s30, 128
          %s1700 = scalar_lea.hbm %s9, %s1699
          %s1702 = sshll.u32 %s1678, 4
          %s1703 = int_to_ptr.vmem [resolvable:$true] %s1702
          %1705 = dma.vmem_to_hbm [thread:$0]  %s1703, 128, %s1700, %s1675
        $region64: #{tpu_custom_call.1} parent=51 // pred_fallthru
          _
      $region52: #{tpu_custom_call.1} parent=5 // pred_fallthru
        _
      %p1706 = scmp.le.s32.totalorder 2, %s25
      // Predicated region
      $region65: #{tpu_custom_call.1} parent=5 // pred_check
        %p1707 = pneg %p1706
      $region66: #{tpu_custom_call.1} parent=5 // pred_check_branch
        %1709 = sbr.rel (%p1707) target = $region68
      $region67: #{tpu_custom_call.1} parent=5 // pred_region
        %s1710 = ssub.s32 %s25, 2
        // Predicated region
        $region69: #{tpu_custom_call.1} parent=67 // pred_check
          %p1711 = pneg %p227
        $region70: #{tpu_custom_call.1} parent=67 // pred_check_branch
          %1713 = sbr.rel (%p1711) target = $region72
        $region71: #{tpu_custom_call.1} parent=67 // pred_region
          %s1714 = sand.u32 %s212, 1
          %s1715 = scalar_lea.sflag [#allocation4], %s1714
          %s1716 = sand.u32 %s212, 1
          %s1717 = smul.addr %s1716, 16
          %s1718 = scalar_lea.vmem [#allocation5], %s1717
          %1719 = dma.done %s1715, 256
        $region72: #{tpu_custom_call.1} parent=67 // pred_fallthru
          _
        // Predicated region
        $region73: #{tpu_custom_call.1} parent=67 // pred_check
          %p1720 = pneg %p253
        $region74: #{tpu_custom_call.1} parent=67 // pred_check_branch
          %1722 = sbr.rel (%p1720) target = $region76
        $region75: #{tpu_custom_call.1} parent=67 // pred_region
          %s1723 = sand.u32 %s238, 1
          %s1724 = scalar_lea.sflag [#allocation7], %s1723
          %s1725 = sand.u32 %s238, 1
          %s1726 = smul.addr %s1725, 8
          %s1727 = scalar_lea.vmem [#allocation6], %s1726
          %1728 = dma.done %s1724, 128
        $region76: #{tpu_custom_call.1} parent=67 // pred_fallthru
          _
      $region68: #{tpu_custom_call.1} parent=5 // pred_fallthru
        _
    $region6: #{tpu_custom_call.1} parent=1 // loop_footer
      %s29 = sadd.s32 1, %s25
    $region7: #{tpu_custom_call.1} parent=1 // loop_footer_branch
      %24 = sbr.rel target = $region3
    $region8: #{tpu_custom_call.1} parent=1 // loop_exit
      _
    %1729 = vsyncpa [#allocation3], 1
    %s1730 = scalar_lea.sflag [#allocation3], 1
    %1731 = vsyncpa %s1730, 1
    %1732 = vsyncpa [#allocation4], 1
    %s1733 = scalar_lea.sflag [#allocation4], 1
    %1734 = vsyncpa %s1733, 1
    %1735 = vsyncpa [#allocation7], 1
    %s1736 = scalar_lea.sflag [#allocation7], 1
    %1737 = vsyncpa %s1736, 1

</llo_original>
